<compile_context>
chip_gen: v7x
topology: tpu7x:2x2x1
jax: 0.10.0
libtpu: 0.0.40
codegen_flags: <defaults>
</compile_context>

<pallas_src>
import jax
import jax.numpy as jnp
from jax.experimental import pallas as pl
from jax.experimental.pallas import tpu as pltpu

IN_FEATURES = 3028
HIDDEN = 50
OUT = 10
OUT_PAD = 128          # lane-dense output slab; real logits live in [:, :OUT]


def _round_up(n, m):
    return ((n + m - 1) // m) * m


def fused_mlp_kernel(x_ref, w_ref, b_ref, o_ref):
    # Cast x to bf16 in-kernel (VALU, hidden under the x DMA); MXU matmul with
    # f32 accumulation.  K = 3028 is unaligned -- Mosaic zero-pads/masks the
    # tail tiles of the contraction automatically.
    x = x_ref[...].astype(jnp.bfloat16)
    y = jnp.dot(x, w_ref[...], preferred_element_type=jnp.float32)
    y = y + b_ref[...]
    # Numerically stable sigmoid for any logit magnitude; tanh -> EUP.
    o_ref[...] = (0.5 * (jnp.tanh(0.5 * y) + 1.0)).astype(o_ref.dtype)


def fuse_params(w1, b1, w2, b2):
    """One-time weight prep (hoist out of the per-call path).

    (x @ W1 + b1) @ W2 + b2 == x @ (W1 @ W2) + (b1 @ W2 + b2)  -- valid because
    the module has no nonlinearity between fc1 and fc2.
    Returns (w_fused: (3028, 128) bf16, b_fused: (1, 128) f32).
    """
    wf = jnp.dot(w1, w2, preferred_element_type=jnp.float32)                 # (3028, 10)
    bf = jnp.dot(b1.reshape(1, -1), w2,
                 preferred_element_type=jnp.float32) + b2.reshape(1, -1)     # (1, 10)
    w_fused = jnp.pad(wf, ((0, 0), (0, OUT_PAD - OUT))).astype(jnp.bfloat16)
    b_fused = jnp.pad(bf, ((0, 0), (0, OUT_PAD - OUT))).astype(jnp.float32)
    return w_fused, b_fused


def starting_network_forward(x, w_fused, b_fused, *, tile_b=1024):
    """x: (B, 3028) f32 (or bf16). Returns sigmoid((x@W1+b1)@W2+b2) as (B, 10) f32."""
    B, K = x.shape
    assert K == IN_FEATURES, f"expected last dim {IN_FEATURES}, got {K}"

    # Pad batch only to the sublane quantum (8); the grid handles a ragged
    # last tile, so at most 7 ghost rows ever exist.
    rem = (-B) % 8
    x_in = jnp.pad(x, ((0, rem), (0, 0))) if rem else x
    Bp = B + rem

    tile_b = max(8, min(_round_up(tile_b, 8), Bp))
    grid = (pl.cdiv(Bp, tile_b),)

    x_itemsize = jnp.dtype(x.dtype).itemsize
    k_lanes = _round_up(IN_FEATURES, 128)  # VMEM lane padding, for budgeting only
    vmem_need = (2 * tile_b * k_lanes * x_itemsize     # double-buffered x tile
                 + 2 * k_lanes * OUT_PAD * 2           # fused weight (bf16, resident)
                 + 2 * tile_b * OUT_PAD * 2            # output tile (bf16)
                 + (1 << 20))                          # slack
    # Default tile_b=1024 -> ~42 MiB limit: safe on v7x (64 MiB/TC) and
    # v5e/v6e (128 MiB).  Larger tile_b (v5e/v6e only) raises it accordingly.
    vmem_limit = int(min(max(vmem_need * 3 // 2, 32 << 20), 100 << 20))

    cost = pl.CostEstimate(
        flops=2 * Bp * IN_FEATURES * OUT,              # useful FLOPs (N=10)
        transcendentals=Bp * OUT_PAD,
        bytes_accessed=(Bp * IN_FEATURES * x_itemsize  # x read (no extra copy)
                        + IN_FEATURES * OUT_PAD * 2    # fused weight (bf16)
                        + OUT_PAD * 4                  # fused bias
                        + Bp * OUT_PAD * 2),           # bf16 output slab
    )

    out_padded = pl.pallas_call(
        fused_mlp_kernel,
        out_shape=jax.ShapeDtypeStruct((Bp, OUT_PAD), jnp.bfloat16),
        grid=grid,
        in_specs=[
            pl.BlockSpec((tile_b, IN_FEATURES), lambda i: (i, 0)),   # x tile (pipelined)
            pl.BlockSpec((IN_FEATURES, OUT_PAD), lambda i: (0, 0)),  # fused weight (resident)
            pl.BlockSpec((1, OUT_PAD), lambda i: (0, 0)),            # fused bias (resident)
        ],
        out_specs=pl.BlockSpec((tile_b, OUT_PAD), lambda i: (i, 0)),
        compiler_params=pltpu.CompilerParams(
            dimension_semantics=("parallel",),   # shard batch tiles across TCs on v7x
            vmem_limit_bytes=vmem_limit,
        ),
        cost_estimate=cost,
    )(x_in, w_fused, b_fused)

    # Lazy slice + cast back to the module's f32 output dtype; under jit this
    # fuses into the consumer instead of materializing the 128-wide slab.
    return out_padded[:B, :OUT].astype(jnp.float32)


def init_params(key):
    """Deterministic init mimicking nn.Linear's U(-1/sqrt(fan_in), 1/sqrt(fan_in))."""
    k1, k2, k3, k4 = jax.random.split(key, 4)
    lim1 = 1.0 / jnp.sqrt(jnp.float32(IN_FEATURES))
    lim2 = 1.0 / jnp.sqrt(jnp.float32(HIDDEN))
    w1 = jax.random.uniform(k1, (IN_FEATURES, HIDDEN), jnp.float32, -lim1, lim1)
    b1 = jax.random.uniform(k2, (1, HIDDEN), jnp.float32, -lim1, lim1)
    w2 = jax.random.uniform(k3, (HIDDEN, OUT), jnp.float32, -lim2, lim2)
    b2 = jax.random.uniform(k4, (1, OUT), jnp.float32, -lim2, lim2)
    return w1, b1, w2, b2


if __name__ == "__main__":
    key = jax.random.PRNGKey(0)
    pkey, xkey1, xkey2 = jax.random.split(key, 3)
    w1, b1, w2, b2 = init_params(pkey)

    # One-time weight-side prep (hoisted out of the forward path).
    w_fused, b_fused = fuse_params(w1, b1, w2, b2)
    w_fused, b_fused = jax.block_until_ready((w_fused, b_fused))

    fwd = jax.jit(starting_network_forward, static_argnames=("tile_b",))

    def ref_forward(x):
        return jax.nn.sigmoid((x @ w1 + b1) @ w2 + b2)

    # Test 1: small batch, single tile.
    B = 8
    x = jax.random.normal(xkey1, (B, IN_FEATURES), jnp.float32)
    out = jax.block_until_ready(fwd(x, w_fused, b_fused))
    ref = ref_forward(x)
    assert out.shape == (B, OUT)
    assert out.dtype == jnp.float32
    assert jnp.allclose(out, ref, atol=2e-2, rtol=0.0)

    # Test 2: batch not a multiple of 8 + tile that does not divide it
    # (exercises the sublane pad and the ragged last grid tile).
    B2 = 40
    x2 = jax.random.normal(xkey2, (B2, IN_FEATURES), jnp.float32)
    out2 = jax.block_until_ready(fwd(x2, w_fused, b_fused, tile_b=16))
    ref2 = ref_forward(x2)
    assert out2.shape == (B2, OUT)
    assert jnp.allclose(out2, ref2, atol=2e-2, rtol=0.0)

    print("KERNEL_OK")
</pallas_src>

<mosaic_0001>
module attributes {stable_mosaic.version = 11 : i64} {
  func.func @fused_mlp_kernel(%arg0: i32, %arg1: memref<8x3028xf32, #tpu.memory_space<vmem>>, %arg2: memref<3028x128xbf16, #tpu.memory_space<vmem>>, %arg3: memref<1x128xf32, #tpu.memory_space<vmem>>, %arg4: memref<8x128xbf16, #tpu.memory_space<vmem>>) attributes {dimension_semantics = [#tpu.dimension_semantics<parallel>], iteration_bounds = array<i64: 1>, scalar_prefetch = 0 : i64, scratch_operands = 0 : i64, tpu.core_type = #tpu.core_type<tc>, window_params = [{transform_indices = @transform_0, window_bounds = array<i64: 8, 3028>}, {pipeline_mode = #tpu.pipeline_mode<synchronous>, transform_indices = @transform_1, window_bounds = array<i64: 3028, 128>}, {pipeline_mode = #tpu.pipeline_mode<synchronous>, transform_indices = @transform_2, window_bounds = array<i64: 1, 128>}, {transform_indices = @transform_3, window_bounds = array<i64: 8, 128>}]} {
    %c0 = arith.constant 0 : index
    %c0_0 = arith.constant 0 : index
    %0 = vector.load %arg1[%c0, %c0_0] : memref<8x3028xf32, #tpu.memory_space<vmem>>, vector<8x3028xf32>
    %1 = arith.truncf %0 : vector<8x3028xf32> to vector<8x3028xbf16>
    %c0_1 = arith.constant 0 : index
    %c0_2 = arith.constant 0 : index
    %2 = vector.load %arg2[%c0_1, %c0_2] : memref<3028x128xbf16, #tpu.memory_space<vmem>>, vector<3028x128xbf16>
    %cst = arith.constant dense<0.000000e+00> : vector<8x128xf32>
    %3 = tpu.matmul %1, %2, %cst {dimension_numbers = #tpu.dot_dimension_numbers<[1], [0], [0], [1], [0, 0, 1, 1], [], []>} : vector<8x3028xbf16>, vector<3028x128xbf16>, vector<8x128xf32> -> vector<8x128xf32>
    %c0_3 = arith.constant 0 : index
    %c0_4 = arith.constant 0 : index
    %4 = vector.load %arg3[%c0_3, %c0_4] : memref<1x128xf32, #tpu.memory_space<vmem>>, vector<1x128xf32>
    %5 = vector.broadcast %4 : vector<1x128xf32> to vector<8x128xf32>
    %6 = arith.addf %3, %5 : vector<8x128xf32>
    %cst_5 = arith.constant 5.000000e-01 : f32
    %7 = vector.broadcast %cst_5 : f32 to vector<8x128xf32>
    %8 = arith.mulf %7, %6 : vector<8x128xf32>
    %9 = math.tanh %8 : vector<8x128xf32>
    %cst_6 = arith.constant 1.000000e+00 : f32
    %10 = vector.broadcast %cst_6 : f32 to vector<8x128xf32>
    %11 = arith.addf %9, %10 : vector<8x128xf32>
    %cst_7 = arith.constant 5.000000e-01 : f32
    %12 = vector.broadcast %cst_7 : f32 to vector<8x128xf32>
    %13 = arith.mulf %12, %11 : vector<8x128xf32>
    %14 = arith.truncf %13 : vector<8x128xf32> to vector<8x128xbf16>
    %c0_8 = arith.constant 0 : index
    %c0_9 = arith.constant 0 : index
    %15 = vector.load %arg4[%c0_8, %c0_9] : memref<8x128xbf16, #tpu.memory_space<vmem>>, vector<8x128xbf16>
    tpu.vector_store %arg4[%c0_8, %c0_9], %14 {strides = array<i32>} : memref<8x128xbf16, #tpu.memory_space<vmem>>, vector<8x128xbf16>,
    return
  }
  func.func @transform_0(%arg0: i32) -> (i32, i32) {
    %c0_i32 = arith.constant 0 : i32
    %c0_i32_0 = arith.constant 0 : i32
    return %arg0, %c0_i32 : i32, i32
  }
  func.func @transform_1(%arg0: i32) -> (i32, i32) {
    %c0_i32 = arith.constant 0 : i32
    %c0_i32_0 = arith.constant 0 : i32
    %c0_i32_1 = arith.constant 0 : i32
    return %c0_i32, %c0_i32_0 : i32, i32
  }
  func.func @transform_2(%arg0: i32) -> (i32, i32) {
    %c0_i32 = arith.constant 0 : i32
    %c0_i32_0 = arith.constant 0 : i32
    %c0_i32_1 = arith.constant 0 : i32
    return %c0_i32, %c0_i32_0 : i32, i32
  }
  func.func @transform_3(%arg0: i32) -> (i32, i32) {
    %c0_i32 = arith.constant 0 : i32
    %c0_i32_0 = arith.constant 0 : i32
    return %arg0, %c0_i32 : i32, i32
  }
}

</mosaic_0001>

<llo_original>
// kernel: starting_network_forward.1
$region0: #{starting_network_forward.1}
  #allocation0 [shape = 'u32[]', space=smem, size = 0x4, offset = 0x4, fixed_abs, tag = 'smem constant byte address 0x4 - core index']
  #allocation1 [shape = 'u32[144,128]{1,0:T(1,128)}', space=vmem, size = 0x12000, scoped, tag = 'internal scratch']
  %s0 = inlined_call_operand.hbm [shape: f32[8,3028], index: 0, kind: input, shape index: {}]
  %s1 = inlined_call_operand.hbm [shape: bf16[3028,128], index: 1, kind: input, shape index: {}]
  %s2 = inlined_call_operand.vmem [shape: f32[1,128], index: 2, kind: input, shape index: {}]
  %s3 = inlined_call_operand.vmem [shape: bf16[8,128], index: 3, kind: output, shape index: {}]
  %s4 = sld [smem:[#allocation0]]
  $region30: #{starting_network_forward.1} parent=0
    _
  %s6 = ssub.s32 1, %s4
  %s7 = scalar_select 0, %s6, %s4
  $region1: #{starting_network_forward.1} parent=0
    #allocation2 [shape = 'u8[98304]{0}', space=vmem, size = 0x18000, scoped, tag = 'input window, operand 0, single buffered']
    #allocation3 [shape = 's32[1]{0}', space=sflag, size = 0x4, scoped, tag = 'scoped memory for starting_network_forward.1']
    #allocation4 [shape = 'u8[776192]{0}', space=vmem, size = 0xbd800, scoped, tag = 'input window, operand 1, single buffered']
    #allocation5 [shape = 's32[1]{0}', space=sflag, size = 0x4, scoped, tag = 'scoped memory for starting_network_forward.1']
    %8 = vsyncpa [#allocation3], 0
    %9 = vsyncpa [#allocation5], 0
    // Predicated region
    $region2: #{starting_network_forward.1} parent=1 // pred_check
      _
    $region3: #{starting_network_forward.1} parent=1 // pred_check_branch
      %11 = sbr.rel (0) target = $region5
    $region4: #{starting_network_forward.1} parent=1 // pred_region
      %s13 = ssub.s32 3072, 3072
      %14 = vsyncadd [#allocation3], %s13
      %s16 = sshll.u32 [#allocation2], 4
      %s17 = int_to_ptr.vmem [resolvable:$true] %s16
      %19 = dma.hbm_to_vmem [thread:$0]  %s0, 3072, %s17, [#allocation3]
    $region5: #{starting_network_forward.1} parent=1 // pred_fallthru
      _
    // Predicated region
    $region6: #{starting_network_forward.1} parent=1 // pred_check
      _
    $region7: #{starting_network_forward.1} parent=1 // pred_check_branch
      %21 = sbr.rel (0) target = $region9
    $region8: #{starting_network_forward.1} parent=1 // pred_region
      %s23 = ssub.s32 24256, 24256
      %24 = vsyncadd [#allocation5], %s23
      %s25 = sshll.u32 [#allocation4], 4
      %s26 = int_to_ptr.vmem [resolvable:$true] %s25
      %31 = dma.hbm_to_vmem [thread:$0]  %s1, 24256, %s26, [#allocation5], 64, 64, 4
    $region9: #{starting_network_forward.1} parent=1 // pred_fallthru
      _
    // Predicated region
    $region10: #{starting_network_forward.1} parent=1 // pred_check
      _
    $region11: #{starting_network_forward.1} parent=1 // pred_check_branch
      %33 = sbr.rel (0) target = $region13
    $region12: #{starting_network_forward.1} parent=1 // pred_region
      _
    $region13: #{starting_network_forward.1} parent=1 // pred_fallthru
      _
    // Predicated region
    $region14: #{starting_network_forward.1} parent=1 // pred_check
      _
    $region15: #{starting_network_forward.1} parent=1 // pred_check_branch
      %35 = sbr.rel (0) target = $region17
    $region16: #{starting_network_forward.1} parent=1 // pred_region
      %36 = dma.done [#allocation3], 3072
    $region17: #{starting_network_forward.1} parent=1 // pred_fallthru
      _
    // Predicated region
    $region18: #{starting_network_forward.1} parent=1 // pred_check
      _
    $region19: #{starting_network_forward.1} parent=1 // pred_check_branch
      %38 = sbr.rel (0) target = $region21
    $region20: #{starting_network_forward.1} parent=1 // pred_region
      %39 = dma.done [#allocation5], 24256
    $region21: #{starting_network_forward.1} parent=1 // pred_fallthru
      _
    %v41 = vld [vmem:[#allocation2] sm:$0xff]
    %v42 = vld [vmem:[#allocation2 + $0x8] sm:$0xff]
    %v43 = vld [vmem:[#allocation2 + $0x10] sm:$0xff]
    %v44 = vld [vmem:[#allocation2 + $0x18] sm:$0xff]
    %v45 = vld [vmem:[#allocation2 + $0x20] sm:$0xff]
    %v46 = vld [vmem:[#allocation2 + $0x28] sm:$0xff]
    %v47 = vld [vmem:[#allocation2 + $0x30] sm:$0xff]
    %v48 = vld [vmem:[#allocation2 + $0x38] sm:$0xff]
    %v49 = vld [vmem:[#allocation2 + $0x40] sm:$0xff]
    %v50 = vld [vmem:[#allocation2 + $0x48] sm:$0xff]
    %v51 = vld [vmem:[#allocation2 + $0x50] sm:$0xff]
    %v52 = vld [vmem:[#allocation2 + $0x58] sm:$0xff]
    %v53 = vld [vmem:[#allocation2 + $0x60] sm:$0xff]
    %v54 = vld [vmem:[#allocation2 + $0x68] sm:$0xff]
    %v55 = vld [vmem:[#allocation2 + $0x70] sm:$0xff]
    %v56 = vld [vmem:[#allocation2 + $0x78] sm:$0xff]
    %v57 = vld [vmem:[#allocation2 + $0x80] sm:$0xff]
    %v58 = vld [vmem:[#allocation2 + $0x88] sm:$0xff]
    %v59 = vld [vmem:[#allocation2 + $0x90] sm:$0xff]
    %v60 = vld [vmem:[#allocation2 + $0x98] sm:$0xff]
    %v61 = vld [vmem:[#allocation2 + $0xa0] sm:$0xff]
    %v62 = vld [vmem:[#allocation2 + $0xa8] sm:$0xff]
    %v63 = vld [vmem:[#allocation2 + $0xb0] sm:$0xff]
    %v64 = vld [vmem:[#allocation2 + $0xb8] sm:$0xff]
    %v65 = vpack.c.bf16 %v41, %v41
    %v66 = vpack.c.bf16 %v42, %v42
    %v67 = vpack.c.bf16 %v43, %v43
    %v68 = vpack.c.bf16 %v44, %v44
    %v69 = vpack.c.bf16 %v45, %v45
    %v70 = vpack.c.bf16 %v46, %v46
    %v71 = vpack.c.bf16 %v47, %v47
    %v72 = vpack.c.bf16 %v48, %v48
    %v73 = vpack.c.bf16 %v49, %v49
    %v74 = vpack.c.bf16 %v50, %v50
    %v75 = vpack.c.bf16 %v51, %v51
    %v76 = vpack.c.bf16 %v52, %v52
    %v77 = vpack.c.bf16 %v53, %v53
    %v78 = vpack.c.bf16 %v54, %v54
    %v79 = vpack.c.bf16 %v55, %v55
    %v80 = vpack.c.bf16 %v56, %v56
    %v81 = vpack.c.bf16 %v57, %v57
    %v82 = vpack.c.bf16 %v58, %v58
    %v83 = vpack.c.bf16 %v59, %v59
    %v84 = vpack.c.bf16 %v60, %v60
    %v85 = vpack.c.bf16 %v61, %v61
    %v86 = vpack.c.bf16 %v62, %v62
    %v87 = vpack.c.bf16 %v63, %v63
    %v88 = vpack.c.bf16 %v64, %v64
    %v89 = vld [vmem:[#allocation4] sm:$0xf]
    %v90 = vld [vmem:[#allocation4 + $0x4] sm:$0xf]
    %v91 = vld [vmem:[#allocation4 + $0x8] sm:$0xf]
    %v92 = vld [vmem:[#allocation4 + $0xc] sm:$0xf]
    %v93 = vld [vmem:[#allocation4 + $0x10] sm:$0xf]
    %v94 = vld [vmem:[#allocation4 + $0x14] sm:$0xf]
    %v95 = vld [vmem:[#allocation4 + $0x18] sm:$0xf]
    %v96 = vld [vmem:[#allocation4 + $0x1c] sm:$0xf]
    %v97 = vld [vmem:[#allocation4 + $0x20] sm:$0xf]
    %v98 = vld [vmem:[#allocation4 + $0x24] sm:$0xf]
    %v99 = vld [vmem:[#allocation4 + $0x28] sm:$0xf]
    %v100 = vld [vmem:[#allocation4 + $0x2c] sm:$0xf]
    %v101 = vld [vmem:[#allocation4 + $0x30] sm:$0xf]
    %v102 = vld [vmem:[#allocation4 + $0x34] sm:$0xf]
    %v103 = vld [vmem:[#allocation4 + $0x38] sm:$0xf]
    %v104 = vld [vmem:[#allocation4 + $0x3c] sm:$0xf]
    %v105 = vld [vmem:[#allocation4 + $0x40] sm:$0xf]
    %v106 = vld [vmem:[#allocation4 + $0x44] sm:$0xf]
    %v107 = vld [vmem:[#allocation4 + $0x48] sm:$0xf]
    %v108 = vld [vmem:[#allocation4 + $0x4c] sm:$0xf]
    %v109 = vld [vmem:[#allocation4 + $0x50] sm:$0xf]
    %v110 = vld [vmem:[#allocation4 + $0x54] sm:$0xf]
    %v111 = vld [vmem:[#allocation4 + $0x58] sm:$0xf]
    %v112 = vld [vmem:[#allocation4 + $0x5c] sm:$0xf]
    %v113 = vld [vmem:[#allocation4 + $0x60] sm:$0xf]
    %v114 = vld [vmem:[#allocation4 + $0x64] sm:$0xf]
    %v115 = vld [vmem:[#allocation4 + $0x68] sm:$0xf]
    %v116 = vld [vmem:[#allocation4 + $0x6c] sm:$0xf]
    %v117 = vld [vmem:[#allocation4 + $0x70] sm:$0xf]
    %v118 = vld [vmem:[#allocation4 + $0x74] sm:$0xf]
    %v119 = vld [vmem:[#allocation4 + $0x78] sm:$0xf]
    %v120 = vld [vmem:[#allocation4 + $0x7c] sm:$0xf]
    %v121 = vld [vmem:[#allocation4 + $0x80] sm:$0xf]
    %v122 = vld [vmem:[#allocation4 + $0x84] sm:$0xf]
    %v123 = vld [vmem:[#allocation4 + $0x88] sm:$0xf]
    %v124 = vld [vmem:[#allocation4 + $0x8c] sm:$0xf]
    %v125 = vld [vmem:[#allocation4 + $0x90] sm:$0xf]
    %v126 = vld [vmem:[#allocation4 + $0x94] sm:$0xf]
    %v127 = vld [vmem:[#allocation4 + $0x98] sm:$0xf]
    %v128 = vld [vmem:[#allocation4 + $0x9c] sm:$0xf]
    %v129 = vld [vmem:[#allocation4 + $0xa0] sm:$0xf]
    %v130 = vld [vmem:[#allocation4 + $0xa4] sm:$0xf]
    %v131 = vld [vmem:[#allocation4 + $0xa8] sm:$0xf]
    %v132 = vld [vmem:[#allocation4 + $0xac] sm:$0xf]
    %v133 = vld [vmem:[#allocation4 + $0xb0] sm:$0xf]
    %v134 = vld [vmem:[#allocation4 + $0xb4] sm:$0xf]
    %v135 = vld [vmem:[#allocation4 + $0xb8] sm:$0xf]
    %v136 = vld [vmem:[#allocation4 + $0xbc] sm:$0xf]
    %v137 = vld [vmem:[#allocation4 + $0xc0] sm:$0xf]
    %v138 = vld [vmem:[#allocation4 + $0xc4] sm:$0xf]
    %v139 = vld [vmem:[#allocation4 + $0xc8] sm:$0xf]
    %v140 = vld [vmem:[#allocation4 + $0xcc] sm:$0xf]
    %v141 = vld [vmem:[#allocation4 + $0xd0] sm:$0xf]
    %v142 = vld [vmem:[#allocation4 + $0xd4] sm:$0xf]
    %v143 = vld [vmem:[#allocation4 + $0xd8] sm:$0xf]
    %v144 = vld [vmem:[#allocation4 + $0xdc] sm:$0xf]
    %v145 = vld [vmem:[#allocation4 + $0xe0] sm:$0xf]
    %v146 = vld [vmem:[#allocation4 + $0xe4] sm:$0xf]
    %v147 = vld [vmem:[#allocation4 + $0xe8] sm:$0xf]
    %v148 = vld [vmem:[#allocation4 + $0xec] sm:$0xf]
    %v149 = vld [vmem:[#allocation4 + $0xf0] sm:$0xf]
    %v150 = vld [vmem:[#allocation4 + $0xf4] sm:$0xf]
    %v151 = vld [vmem:[#allocation4 + $0xf8] sm:$0xf]
    %v152 = vld [vmem:[#allocation4 + $0xfc] sm:$0xf]
    %v153 = vld [vmem:[#allocation4 + $0x100] sm:$0xf]
    %v154 = vld [vmem:[#allocation4 + $0x104] sm:$0xf]
    %v155 = vld [vmem:[#allocation4 + $0x108] sm:$0xf]
    %v156 = vld [vmem:[#allocation4 + $0x10c] sm:$0xf]
    %v157 = vld [vmem:[#allocation4 + $0x110] sm:$0xf]
    %v158 = vld [vmem:[#allocation4 + $0x114] sm:$0xf]
    %v159 = vld [vmem:[#allocation4 + $0x118] sm:$0xf]
    %v160 = vld [vmem:[#allocation4 + $0x11c] sm:$0xf]
    %v161 = vld [vmem:[#allocation4 + $0x120] sm:$0xf]
    %v162 = vld [vmem:[#allocation4 + $0x124] sm:$0xf]
    %v163 = vld [vmem:[#allocation4 + $0x128] sm:$0xf]
    %v164 = vld [vmem:[#allocation4 + $0x12c] sm:$0xf]
    %v165 = vld [vmem:[#allocation4 + $0x130] sm:$0xf]
    %v166 = vld [vmem:[#allocation4 + $0x134] sm:$0xf]
    %v167 = vld [vmem:[#allocation4 + $0x138] sm:$0xf]
    %v168 = vld [vmem:[#allocation4 + $0x13c] sm:$0xf]
    %v169 = vld [vmem:[#allocation4 + $0x140] sm:$0xf]
    %v170 = vld [vmem:[#allocation4 + $0x144] sm:$0xf]
    %v171 = vld [vmem:[#allocation4 + $0x148] sm:$0xf]
    %v172 = vld [vmem:[#allocation4 + $0x14c] sm:$0xf]
    %v173 = vld [vmem:[#allocation4 + $0x150] sm:$0xf]
    %v174 = vld [vmem:[#allocation4 + $0x154] sm:$0xf]
    %v175 = vld [vmem:[#allocation4 + $0x158] sm:$0xf]
    %v176 = vld [vmem:[#allocation4 + $0x15c] sm:$0xf]
    %v177 = vld [vmem:[#allocation4 + $0x160] sm:$0xf]
    %v178 = vld [vmem:[#allocation4 + $0x164] sm:$0xf]
    %v179 = vld [vmem:[#allocation4 + $0x168] sm:$0xf]
    %v180 = vld [vmem:[#allocation4 + $0x16c] sm:$0xf]
    %v181 = vld [vmem:[#allocation4 + $0x170] sm:$0xf]
    %v182 = vld [vmem:[#allocation4 + $0x174] sm:$0xf]
    %v183 = vld [vmem:[#allocation4 + $0x178] sm:$0xf]
    %v184 = vld [vmem:[#allocation4 + $0x17c] sm:$0xf]
    %v185 = vld [vmem:[#allocation4 + $0x180] sm:$0xf]
    %v186 = vld [vmem:[#allocation4 + $0x184] sm:$0xf]
    %v187 = vld [vmem:[#allocation4 + $0x188] sm:$0xf]
    %v188 = vld [vmem:[#allocation4 + $0x18c] sm:$0xf]
    %v189 = vld [vmem:[#allocation4 + $0x190] sm:$0xf]
    %v190 = vld [vmem:[#allocation4 + $0x194] sm:$0xf]
    %v191 = vld [vmem:[#allocation4 + $0x198] sm:$0xf]
    %v192 = vld [vmem:[#allocation4 + $0x19c] sm:$0xf]
    %v193 = vld [vmem:[#allocation4 + $0x1a0] sm:$0xf]
    %v194 = vld [vmem:[#allocation4 + $0x1a4] sm:$0xf]
    %v195 = vld [vmem:[#allocation4 + $0x1a8] sm:$0xf]
    %v196 = vld [vmem:[#allocation4 + $0x1ac] sm:$0xf]
    %v197 = vld [vmem:[#allocation4 + $0x1b0] sm:$0xf]
    %v198 = vld [vmem:[#allocation4 + $0x1b4] sm:$0xf]
    %v199 = vld [vmem:[#allocation4 + $0x1b8] sm:$0xf]
    %v200 = vld [vmem:[#allocation4 + $0x1bc] sm:$0xf]
    %v201 = vld [vmem:[#allocation4 + $0x1c0] sm:$0xf]
    %v202 = vld [vmem:[#allocation4 + $0x1c4] sm:$0xf]
    %v203 = vld [vmem:[#allocation4 + $0x1c8] sm:$0xf]
    %v204 = vld [vmem:[#allocation4 + $0x1cc] sm:$0xf]
    %v205 = vld [vmem:[#allocation4 + $0x1d0] sm:$0xf]
    %v206 = vld [vmem:[#allocation4 + $0x1d4] sm:$0xf]
    %v207 = vld [vmem:[#allocation4 + $0x1d8] sm:$0xf]
    %v208 = vld [vmem:[#allocation4 + $0x1dc] sm:$0xf]
    %v209 = vld [vmem:[#allocation4 + $0x1e0] sm:$0xf]
    %v210 = vld [vmem:[#allocation4 + $0x1e4] sm:$0xf]
    %v211 = vld [vmem:[#allocation4 + $0x1e8] sm:$0xf]
    %v212 = vld [vmem:[#allocation4 + $0x1ec] sm:$0xf]
    %v213 = vld [vmem:[#allocation4 + $0x1f0] sm:$0xf]
    %v214 = vld [vmem:[#allocation4 + $0x1f4] sm:$0xf]
    %v215 = vld [vmem:[#allocation4 + $0x1f8] sm:$0xf]
    %v216 = vld [vmem:[#allocation4 + $0x1fc] sm:$0xf]
    %v217 = vld [vmem:[#allocation4 + $0x200] sm:$0xf]
    %v218 = vld [vmem:[#allocation4 + $0x204] sm:$0xf]
    %v219 = vld [vmem:[#allocation4 + $0x208] sm:$0xf]
    %v220 = vld [vmem:[#allocation4 + $0x20c] sm:$0xf]
    %v221 = vld [vmem:[#allocation4 + $0x210] sm:$0xf]
    %v222 = vld [vmem:[#allocation4 + $0x214] sm:$0xf]
    %v223 = vld [vmem:[#allocation4 + $0x218] sm:$0xf]
    %v224 = vld [vmem:[#allocation4 + $0x21c] sm:$0xf]
    %v225 = vld [vmem:[#allocation4 + $0x220] sm:$0xf]
    %v226 = vld [vmem:[#allocation4 + $0x224] sm:$0xf]
    %v227 = vld [vmem:[#allocation4 + $0x228] sm:$0xf]
    %v228 = vld [vmem:[#allocation4 + $0x22c] sm:$0xf]
    %v229 = vld [vmem:[#allocation4 + $0x230] sm:$0xf]
    %v230 = vld [vmem:[#allocation4 + $0x234] sm:$0xf]
    %v231 = vld [vmem:[#allocation4 + $0x238] sm:$0xf]
    %v232 = vld [vmem:[#allocation4 + $0x23c] sm:$0xf]
    %v233 = vld [vmem:[#allocation4 + $0x240] sm:$0xf]
    %v234 = vld [vmem:[#allocation4 + $0x244] sm:$0xf]
    %v235 = vld [vmem:[#allocation4 + $0x248] sm:$0xf]
    %v236 = vld [vmem:[#allocation4 + $0x24c] sm:$0xf]
    %v237 = vld [vmem:[#allocation4 + $0x250] sm:$0xf]
    %v238 = vld [vmem:[#allocation4 + $0x254] sm:$0xf]
    %v239 = vld [vmem:[#allocation4 + $0x258] sm:$0xf]
    %v240 = vld [vmem:[#allocation4 + $0x25c] sm:$0xf]
    %v241 = vld [vmem:[#allocation4 + $0x260] sm:$0xf]
    %v242 = vld [vmem:[#allocation4 + $0x264] sm:$0xf]
    %v243 = vld [vmem:[#allocation4 + $0x268] sm:$0xf]
    %v244 = vld [vmem:[#allocation4 + $0x26c] sm:$0xf]
    %v245 = vld [vmem:[#allocation4 + $0x270] sm:$0xf]
    %v246 = vld [vmem:[#allocation4 + $0x274] sm:$0xf]
    %v247 = vld [vmem:[#allocation4 + $0x278] sm:$0xf]
    %v248 = vld [vmem:[#allocation4 + $0x27c] sm:$0xf]
    %v249 = vld [vmem:[#allocation4 + $0x280] sm:$0xf]
    %v250 = vld [vmem:[#allocation4 + $0x284] sm:$0xf]
    %v251 = vld [vmem:[#allocation4 + $0x288] sm:$0xf]
    %v252 = vld [vmem:[#allocation4 + $0x28c] sm:$0xf]
    %v253 = vld [vmem:[#allocation4 + $0x290] sm:$0xf]
    %v254 = vld [vmem:[#allocation4 + $0x294] sm:$0xf]
    %v255 = vld [vmem:[#allocation4 + $0x298] sm:$0xf]
    %v256 = vld [vmem:[#allocation4 + $0x29c] sm:$0xf]
    %v257 = vld [vmem:[#allocation4 + $0x2a0] sm:$0xf]
    %v258 = vld [vmem:[#allocation4 + $0x2a4] sm:$0xf]
    %v259 = vld [vmem:[#allocation4 + $0x2a8] sm:$0xf]
    %v260 = vld [vmem:[#allocation4 + $0x2ac] sm:$0xf]
    %v261 = vld [vmem:[#allocation4 + $0x2b0] sm:$0xf]
    %v262 = vld [vmem:[#allocation4 + $0x2b4] sm:$0xf]
    %v263 = vld [vmem:[#allocation4 + $0x2b8] sm:$0xf]
    %v264 = vld [vmem:[#allocation4 + $0x2bc] sm:$0xf]
    %v265 = vld [vmem:[#allocation4 + $0x2c0] sm:$0xf]
    %v266 = vld [vmem:[#allocation4 + $0x2c4] sm:$0xf]
    %v267 = vld [vmem:[#allocation4 + $0x2c8] sm:$0xf]
    %v268 = vld [vmem:[#allocation4 + $0x2cc] sm:$0xf]
    %v269 = vld [vmem:[#allocation4 + $0x2d0] sm:$0xf]
    %v270 = vld [vmem:[#allocation4 + $0x2d4] sm:$0xf]
    %v271 = vld [vmem:[#allocation4 + $0x2d8] sm:$0xf]
    %v272 = vld [vmem:[#allocation4 + $0x2dc] sm:$0xf]
    %v273 = vld [vmem:[#allocation4 + $0x2e0] sm:$0xf]
    %v274 = vld [vmem:[#allocation4 + $0x2e4] sm:$0xf]
    %v275 = vld [vmem:[#allocation4 + $0x2e8] sm:$0xf]
    %v276 = vld [vmem:[#allocation4 + $0x2ec] sm:$0xf]
    %v277 = vld [vmem:[#allocation4 + $0x2f0] sm:$0xf]
    %v278 = vld [vmem:[#allocation4 + $0x2f4] sm:$0xf]
    %v279 = vld [vmem:[#allocation4 + $0x2f8] sm:$0xf]
    %v280 = vld [vmem:[#allocation4 + $0x2fc] sm:$0xf]
    %v281 = vld [vmem:[#allocation4 + $0x300] sm:$0xf]
    %v282 = vld [vmem:[#allocation4 + $0x304] sm:$0xf]
    %v283 = vld [vmem:[#allocation4 + $0x308] sm:$0xf]
    %v284 = vld [vmem:[#allocation4 + $0x30c] sm:$0xf]
    %v285 = vld [vmem:[#allocation4 + $0x310] sm:$0xf]
    %v286 = vld [vmem:[#allocation4 + $0x314] sm:$0xf]
    %v287 = vld [vmem:[#allocation4 + $0x318] sm:$0xf]
    %v288 = vld [vmem:[#allocation4 + $0x31c] sm:$0xf]
    %v289 = vld [vmem:[#allocation4 + $0x320] sm:$0xf]
    %v290 = vld [vmem:[#allocation4 + $0x324] sm:$0xf]
    %v291 = vld [vmem:[#allocation4 + $0x328] sm:$0xf]
    %v292 = vld [vmem:[#allocation4 + $0x32c] sm:$0xf]
    %v293 = vld [vmem:[#allocation4 + $0x330] sm:$0xf]
    %v294 = vld [vmem:[#allocation4 + $0x334] sm:$0xf]
    %v295 = vld [vmem:[#allocation4 + $0x338] sm:$0xf]
    %v296 = vld [vmem:[#allocation4 + $0x33c] sm:$0xf]
    %v297 = vld [vmem:[#allocation4 + $0x340] sm:$0xf]
    %v298 = vld [vmem:[#allocation4 + $0x344] sm:$0xf]
    %v299 = vld [vmem:[#allocation4 + $0x348] sm:$0xf]
    %v300 = vld [vmem:[#allocation4 + $0x34c] sm:$0xf]
    %v301 = vld [vmem:[#allocation4 + $0x350] sm:$0xf]
    %v302 = vld [vmem:[#allocation4 + $0x354] sm:$0xf]
    %v303 = vld [vmem:[#allocation4 + $0x358] sm:$0xf]
    %v304 = vld [vmem:[#allocation4 + $0x35c] sm:$0xf]
    %v305 = vld [vmem:[#allocation4 + $0x360] sm:$0xf]
    %v306 = vld [vmem:[#allocation4 + $0x364] sm:$0xf]
    %v307 = vld [vmem:[#allocation4 + $0x368] sm:$0xf]
    %v308 = vld [vmem:[#allocation4 + $0x36c] sm:$0xf]
    %v309 = vld [vmem:[#allocation4 + $0x370] sm:$0xf]
    %v310 = vld [vmem:[#allocation4 + $0x374] sm:$0xf]
    %v311 = vld [vmem:[#allocation4 + $0x378] sm:$0xf]
    %v312 = vld [vmem:[#allocation4 + $0x37c] sm:$0xf]
    %v313 = vld [vmem:[#allocation4 + $0x380] sm:$0xf]
    %v314 = vld [vmem:[#allocation4 + $0x384] sm:$0xf]
    %v315 = vld [vmem:[#allocation4 + $0x388] sm:$0xf]
    %v316 = vld [vmem:[#allocation4 + $0x38c] sm:$0xf]
    %v317 = vld [vmem:[#allocation4 + $0x390] sm:$0xf]
    %v318 = vld [vmem:[#allocation4 + $0x394] sm:$0xf]
    %v319 = vld [vmem:[#allocation4 + $0x398] sm:$0xf]
    %v320 = vld [vmem:[#allocation4 + $0x39c] sm:$0xf]
    %v321 = vld [vmem:[#allocation4 + $0x3a0] sm:$0xf]
    %v322 = vld [vmem:[#allocation4 + $0x3a4] sm:$0xf]
    %v323 = vld [vmem:[#allocation4 + $0x3a8] sm:$0xf]
    %v324 = vld [vmem:[#allocation4 + $0x3ac] sm:$0xf]
    %v325 = vld [vmem:[#allocation4 + $0x3b0] sm:$0xf]
    %v326 = vld [vmem:[#allocation4 + $0x3b4] sm:$0xf]
    %v327 = vld [vmem:[#allocation4 + $0x3b8] sm:$0xf]
    %v328 = vld [vmem:[#allocation4 + $0x3bc] sm:$0xf]
    %v329 = vld [vmem:[#allocation4 + $0x3c0] sm:$0xf]
    %v330 = vld [vmem:[#allocation4 + $0x3c4] sm:$0xf]
    %v331 = vld [vmem:[#allocation4 + $0x3c8] sm:$0xf]
    %v332 = vld [vmem:[#allocation4 + $0x3cc] sm:$0xf]
    %v333 = vld [vmem:[#allocation4 + $0x3d0] sm:$0xf]
    %v334 = vld [vmem:[#allocation4 + $0x3d4] sm:$0xf]
    %v335 = vld [vmem:[#allocation4 + $0x3d8] sm:$0xf]
    %v336 = vld [vmem:[#allocation4 + $0x3dc] sm:$0xf]
    %v337 = vld [vmem:[#allocation4 + $0x3e0] sm:$0xf]
    %v338 = vld [vmem:[#allocation4 + $0x3e4] sm:$0xf]
    %v339 = vld [vmem:[#allocation4 + $0x3e8] sm:$0xf]
    %v340 = vld [vmem:[#allocation4 + $0x3ec] sm:$0xf]
    %v341 = vld [vmem:[#allocation4 + $0x3f0] sm:$0xf]
    %v342 = vld [vmem:[#allocation4 + $0x3f4] sm:$0xf]
    %v343 = vld [vmem:[#allocation4 + $0x3f8] sm:$0xf]
    %v344 = vld [vmem:[#allocation4 + $0x3fc] sm:$0xf]
    %v345 = vld [vmem:[#allocation4 + $0x400] sm:$0xf]
    %v346 = vld [vmem:[#allocation4 + $0x404] sm:$0xf]
    %v347 = vld [vmem:[#allocation4 + $0x408] sm:$0xf]
    %v348 = vld [vmem:[#allocation4 + $0x40c] sm:$0xf]
    %v349 = vld [vmem:[#allocation4 + $0x410] sm:$0xf]
    %v350 = vld [vmem:[#allocation4 + $0x414] sm:$0xf]
    %v351 = vld [vmem:[#allocation4 + $0x418] sm:$0xf]
    %v352 = vld [vmem:[#allocation4 + $0x41c] sm:$0xf]
    %v353 = vld [vmem:[#allocation4 + $0x420] sm:$0xf]
    %v354 = vld [vmem:[#allocation4 + $0x424] sm:$0xf]
    %v355 = vld [vmem:[#allocation4 + $0x428] sm:$0xf]
    %v356 = vld [vmem:[#allocation4 + $0x42c] sm:$0xf]
    %v357 = vld [vmem:[#allocation4 + $0x430] sm:$0xf]
    %v358 = vld [vmem:[#allocation4 + $0x434] sm:$0xf]
    %v359 = vld [vmem:[#allocation4 + $0x438] sm:$0xf]
    %v360 = vld [vmem:[#allocation4 + $0x43c] sm:$0xf]
    %v361 = vld [vmem:[#allocation4 + $0x440] sm:$0xf]
    %v362 = vld [vmem:[#allocation4 + $0x444] sm:$0xf]
    %v363 = vld [vmem:[#allocation4 + $0x448] sm:$0xf]
    %v364 = vld [vmem:[#allocation4 + $0x44c] sm:$0xf]
    %v365 = vld [vmem:[#allocation4 + $0x450] sm:$0xf]
    %v366 = vld [vmem:[#allocation4 + $0x454] sm:$0xf]
    %v367 = vld [vmem:[#allocation4 + $0x458] sm:$0xf]
    %v368 = vld [vmem:[#allocation4 + $0x45c] sm:$0xf]
    %v369 = vld [vmem:[#allocation4 + $0x460] sm:$0xf]
    %v370 = vld [vmem:[#allocation4 + $0x464] sm:$0xf]
    %v371 = vld [vmem:[#allocation4 + $0x468] sm:$0xf]
    %v372 = vld [vmem:[#allocation4 + $0x46c] sm:$0xf]
    %v373 = vld [vmem:[#allocation4 + $0x470] sm:$0xf]
    %v374 = vld [vmem:[#allocation4 + $0x474] sm:$0xf]
    %v375 = vld [vmem:[#allocation4 + $0x478] sm:$0xf]
    %v376 = vld [vmem:[#allocation4 + $0x47c] sm:$0xf]
    %v377 = vld [vmem:[#allocation4 + $0x480] sm:$0xf]
    %v378 = vld [vmem:[#allocation4 + $0x484] sm:$0xf]
    %v379 = vld [vmem:[#allocation4 + $0x488] sm:$0xf]
    %v380 = vld [vmem:[#allocation4 + $0x48c] sm:$0xf]
    %v381 = vld [vmem:[#allocation4 + $0x490] sm:$0xf]
    %v382 = vld [vmem:[#allocation4 + $0x494] sm:$0xf]
    %v383 = vld [vmem:[#allocation4 + $0x498] sm:$0xf]
    %v384 = vld [vmem:[#allocation4 + $0x49c] sm:$0xf]
    %v385 = vld [vmem:[#allocation4 + $0x4a0] sm:$0xf]
    %v386 = vld [vmem:[#allocation4 + $0x4a4] sm:$0xf]
    %v387 = vld [vmem:[#allocation4 + $0x4a8] sm:$0xf]
    %v388 = vld [vmem:[#allocation4 + $0x4ac] sm:$0xf]
    %v389 = vld [vmem:[#allocation4 + $0x4b0] sm:$0xf]
    %v390 = vld [vmem:[#allocation4 + $0x4b4] sm:$0xf]
    %v391 = vld [vmem:[#allocation4 + $0x4b8] sm:$0xf]
    %v392 = vld [vmem:[#allocation4 + $0x4bc] sm:$0xf]
    %v393 = vld [vmem:[#allocation4 + $0x4c0] sm:$0xf]
    %v394 = vld [vmem:[#allocation4 + $0x4c4] sm:$0xf]
    %v395 = vld [vmem:[#allocation4 + $0x4c8] sm:$0xf]
    %v396 = vld [vmem:[#allocation4 + $0x4cc] sm:$0xf]
    %v397 = vld [vmem:[#allocation4 + $0x4d0] sm:$0xf]
    %v398 = vld [vmem:[#allocation4 + $0x4d4] sm:$0xf]
    %v399 = vld [vmem:[#allocation4 + $0x4d8] sm:$0xf]
    %v400 = vld [vmem:[#allocation4 + $0x4dc] sm:$0xf]
    %v401 = vld [vmem:[#allocation4 + $0x4e0] sm:$0xf]
    %v402 = vld [vmem:[#allocation4 + $0x4e4] sm:$0xf]
    %v403 = vld [vmem:[#allocation4 + $0x4e8] sm:$0xf]
    %v404 = vld [vmem:[#allocation4 + $0x4ec] sm:$0xf]
    %v405 = vld [vmem:[#allocation4 + $0x4f0] sm:$0xf]
    %v406 = vld [vmem:[#allocation4 + $0x4f4] sm:$0xf]
    %v407 = vld [vmem:[#allocation4 + $0x4f8] sm:$0xf]
    %v408 = vld [vmem:[#allocation4 + $0x4fc] sm:$0xf]
    %v409 = vld [vmem:[#allocation4 + $0x500] sm:$0xf]
    %v410 = vld [vmem:[#allocation4 + $0x504] sm:$0xf]
    %v411 = vld [vmem:[#allocation4 + $0x508] sm:$0xf]
    %v412 = vld [vmem:[#allocation4 + $0x50c] sm:$0xf]
    %v413 = vld [vmem:[#allocation4 + $0x510] sm:$0xf]
    %v414 = vld [vmem:[#allocation4 + $0x514] sm:$0xf]
    %v415 = vld [vmem:[#allocation4 + $0x518] sm:$0xf]
    %v416 = vld [vmem:[#allocation4 + $0x51c] sm:$0xf]
    %v417 = vld [vmem:[#allocation4 + $0x520] sm:$0xf]
    %v418 = vld [vmem:[#allocation4 + $0x524] sm:$0xf]
    %v419 = vld [vmem:[#allocation4 + $0x528] sm:$0xf]
    %v420 = vld [vmem:[#allocation4 + $0x52c] sm:$0xf]
    %v421 = vld [vmem:[#allocation4 + $0x530] sm:$0xf]
    %v422 = vld [vmem:[#allocation4 + $0x534] sm:$0xf]
    %v423 = vld [vmem:[#allocation4 + $0x538] sm:$0xf]
    %v424 = vld [vmem:[#allocation4 + $0x53c] sm:$0xf]
    %v425 = vld [vmem:[#allocation4 + $0x540] sm:$0xf]
    %v426 = vld [vmem:[#allocation4 + $0x544] sm:$0xf]
    %v427 = vld [vmem:[#allocation4 + $0x548] sm:$0xf]
    %v428 = vld [vmem:[#allocation4 + $0x54c] sm:$0xf]
    %v429 = vld [vmem:[#allocation4 + $0x550] sm:$0xf]
    %v430 = vld [vmem:[#allocation4 + $0x554] sm:$0xf]
    %v431 = vld [vmem:[#allocation4 + $0x558] sm:$0xf]
    %v432 = vld [vmem:[#allocation4 + $0x55c] sm:$0xf]
    %v433 = vld [vmem:[#allocation4 + $0x560] sm:$0xf]
    %v434 = vld [vmem:[#allocation4 + $0x564] sm:$0xf]
    %v435 = vld [vmem:[#allocation4 + $0x568] sm:$0xf]
    %v436 = vld [vmem:[#allocation4 + $0x56c] sm:$0xf]
    %v437 = vld [vmem:[#allocation4 + $0x570] sm:$0xf]
    %v438 = vld [vmem:[#allocation4 + $0x574] sm:$0xf]
    %v439 = vld [vmem:[#allocation4 + $0x578] sm:$0xf]
    %v440 = vld [vmem:[#allocation4 + $0x57c] sm:$0xf]
    %v441 = vld [vmem:[#allocation4 + $0x580] sm:$0xf]
    %v442 = vld [vmem:[#allocation4 + $0x584] sm:$0xf]
    %v443 = vld [vmem:[#allocation4 + $0x588] sm:$0xf]
    %v444 = vld [vmem:[#allocation4 + $0x58c] sm:$0xf]
    %v445 = vld [vmem:[#allocation4 + $0x590] sm:$0xf]
    %v446 = vld [vmem:[#allocation4 + $0x594] sm:$0xf]
    %v447 = vld [vmem:[#allocation4 + $0x598] sm:$0xf]
    %v448 = vld [vmem:[#allocation4 + $0x59c] sm:$0xf]
    %v449 = vld [vmem:[#allocation4 + $0x5a0] sm:$0xf]
    %v450 = vld [vmem:[#allocation4 + $0x5a4] sm:$0xf]
    %v451 = vld [vmem:[#allocation4 + $0x5a8] sm:$0xf]
    %v452 = vld [vmem:[#allocation4 + $0x5ac] sm:$0xf]
    %v453 = vld [vmem:[#allocation4 + $0x5b0] sm:$0xf]
    %v454 = vld [vmem:[#allocation4 + $0x5b4] sm:$0xf]
    %v455 = vld [vmem:[#allocation4 + $0x5b8] sm:$0xf]
    %v456 = vld [vmem:[#allocation4 + $0x5bc] sm:$0xf]
    %v457 = vld [vmem:[#allocation4 + $0x5c0] sm:$0xf]
    %v458 = vld [vmem:[#allocation4 + $0x5c4] sm:$0xf]
    %v459 = vld [vmem:[#allocation4 + $0x5c8] sm:$0xf]
    %v460 = vld [vmem:[#allocation4 + $0x5cc] sm:$0xf]
    %v461 = vld [vmem:[#allocation4 + $0x5d0] sm:$0xf]
    %v462 = vld [vmem:[#allocation4 + $0x5d4] sm:$0xf]
    %v463 = vld [vmem:[#allocation4 + $0x5d8] sm:$0xf]
    %v464 = vld [vmem:[#allocation4 + $0x5dc] sm:$0xf]
    %v465 = vld [vmem:[#allocation4 + $0x5e0] sm:$0xf]
    %v466 = vld [vmem:[#allocation4 + $0x5e4] sm:$0xf]
    %v467 = vld [vmem:[#allocation4 + $0x5e8] sm:$0x3]
    %v468 = vld [vmem:[%s2] sm:$0x1]
    %v470 = vlaneseq
    %v471 = vshrl.u32 %v470, 7
    %v472 = vsub.s32 0, %v471
    %v473 = vrot.slane %v468, %v472
    %v854 = vunpack.c.l.b16 %v89
    %v855 = vunpack.c.l.b16 %v90
    %v856 = vunpack.c.l.b16 %v91
    %v857 = vunpack.c.l.b16 %v92
    %v858 = vunpack.c.l.b16 %v93
    %v859 = vunpack.c.l.b16 %v94
    %v860 = vunpack.c.l.b16 %v95
    %v861 = vunpack.c.l.b16 %v96
    %v862 = vunpack.c.l.b16 %v97
    %v863 = vunpack.c.l.b16 %v98
    %v864 = vunpack.c.l.b16 %v99
    %v865 = vunpack.c.l.b16 %v100
    %v866 = vunpack.c.l.b16 %v101
    %v867 = vunpack.c.l.b16 %v102
    %v868 = vunpack.c.l.b16 %v103
    %v869 = vunpack.c.l.b16 %v104
    %v870 = vunpack.c.l.b16 %v105
    %v871 = vunpack.c.l.b16 %v106
    %v872 = vunpack.c.l.b16 %v107
    %v873 = vunpack.c.l.b16 %v108
    %v874 = vunpack.c.l.b16 %v109
    %v875 = vunpack.c.l.b16 %v110
    %v876 = vunpack.c.l.b16 %v111
    %v877 = vunpack.c.l.b16 %v112
    %v878 = vunpack.c.l.b16 %v113
    %v879 = vunpack.c.l.b16 %v114
    %v880 = vunpack.c.l.b16 %v115
    %v881 = vunpack.c.l.b16 %v116
    %v882 = vunpack.c.l.b16 %v117
    %v883 = vunpack.c.l.b16 %v118
    %v884 = vunpack.c.l.b16 %v119
    %v885 = vunpack.c.l.b16 %v120
    %v886 = vunpack.c.l.b16 %v121
    %v887 = vunpack.c.l.b16 %v122
    %v888 = vunpack.c.l.b16 %v123
    %v889 = vunpack.c.l.b16 %v124
    %v890 = vunpack.c.l.b16 %v125
    %v891 = vunpack.c.l.b16 %v126
    %v892 = vunpack.c.l.b16 %v127
    %v893 = vunpack.c.l.b16 %v128
    %v894 = vunpack.c.l.b16 %v129
    %v895 = vunpack.c.l.b16 %v130
    %v896 = vunpack.c.l.b16 %v131
    %v897 = vunpack.c.l.b16 %v132
    %v898 = vunpack.c.l.b16 %v133
    %v899 = vunpack.c.l.b16 %v134
    %v900 = vunpack.c.l.b16 %v135
    %v901 = vunpack.c.l.b16 %v136
    %v902 = vunpack.c.l.b16 %v137
    %v903 = vunpack.c.l.b16 %v138
    %v904 = vunpack.c.l.b16 %v139
    %v905 = vunpack.c.l.b16 %v140
    %v906 = vunpack.c.l.b16 %v141
    %v907 = vunpack.c.l.b16 %v142
    %v908 = vunpack.c.l.b16 %v143
    %v909 = vunpack.c.l.b16 %v144
    %v910 = vunpack.c.l.b16 %v145
    %v911 = vunpack.c.l.b16 %v146
    %v912 = vunpack.c.l.b16 %v147
    %v913 = vunpack.c.l.b16 %v148
    %v914 = vunpack.c.l.b16 %v149
    %v915 = vunpack.c.l.b16 %v150
    %v916 = vunpack.c.l.b16 %v151
    %v917 = vunpack.c.l.b16 %v152
    %v918 = vunpack.c.l.b16 %v153
    %v919 = vunpack.c.l.b16 %v154
    %v920 = vunpack.c.l.b16 %v155
    %v921 = vunpack.c.l.b16 %v156
    %v922 = vunpack.c.l.b16 %v157
    %v923 = vunpack.c.l.b16 %v158
    %v924 = vunpack.c.l.b16 %v159
    %v925 = vunpack.c.l.b16 %v160
    %v926 = vunpack.c.l.b16 %v161
    %v927 = vunpack.c.l.b16 %v162
    %v928 = vunpack.c.l.b16 %v163
    %v929 = vunpack.c.l.b16 %v164
    %v930 = vunpack.c.l.b16 %v165
    %v931 = vunpack.c.l.b16 %v166
    %v932 = vunpack.c.l.b16 %v167
    %v933 = vunpack.c.l.b16 %v168
    %v934 = vunpack.c.l.b16 %v169
    %v935 = vunpack.c.l.b16 %v170
    %v936 = vunpack.c.l.b16 %v171
    %v937 = vunpack.c.l.b16 %v172
    %v938 = vunpack.c.l.b16 %v173
    %v939 = vunpack.c.l.b16 %v174
    %v940 = vunpack.c.l.b16 %v175
    %v941 = vunpack.c.l.b16 %v176
    %v942 = vunpack.c.l.b16 %v177
    %v943 = vunpack.c.l.b16 %v178
    %v944 = vunpack.c.l.b16 %v179
    %v945 = vunpack.c.l.b16 %v180
    %v946 = vunpack.c.l.b16 %v181
    %v947 = vunpack.c.l.b16 %v182
    %v948 = vunpack.c.l.b16 %v183
    %v949 = vunpack.c.l.b16 %v184
    %v950 = vunpack.c.l.b16 %v185
    %v951 = vunpack.c.l.b16 %v186
    %v952 = vunpack.c.l.b16 %v187
    %v953 = vunpack.c.l.b16 %v188
    %v954 = vunpack.c.l.b16 %v189
    %v955 = vunpack.c.l.b16 %v190
    %v956 = vunpack.c.l.b16 %v191
    %v957 = vunpack.c.l.b16 %v192
    %v958 = vunpack.c.l.b16 %v193
    %v959 = vunpack.c.l.b16 %v194
    %v960 = vunpack.c.l.b16 %v195
    %v961 = vunpack.c.l.b16 %v196
    %v962 = vunpack.c.l.b16 %v197
    %v963 = vunpack.c.l.b16 %v198
    %v964 = vunpack.c.l.b16 %v199
    %v965 = vunpack.c.l.b16 %v200
    %v966 = vunpack.c.l.b16 %v201
    %v967 = vunpack.c.l.b16 %v202
    %v968 = vunpack.c.l.b16 %v203
    %v969 = vunpack.c.l.b16 %v204
    %v970 = vunpack.c.l.b16 %v205
    %v971 = vunpack.c.l.b16 %v206
    %v972 = vunpack.c.l.b16 %v207
    %v973 = vunpack.c.l.b16 %v208
    %v974 = vunpack.c.l.b16 %v209
    %v975 = vunpack.c.l.b16 %v210
    %v976 = vunpack.c.l.b16 %v211
    %v977 = vunpack.c.l.b16 %v212
    %v978 = vunpack.c.l.b16 %v213
    %v979 = vunpack.c.l.b16 %v214
    %v980 = vunpack.c.l.b16 %v215
    %v981 = vunpack.c.l.b16 %v216
    %v982 = vunpack.c.l.b16 %v217
    %v983 = vunpack.c.l.b16 %v218
    %v984 = vunpack.c.l.b16 %v219
    %v985 = vunpack.c.l.b16 %v220
    %v986 = vunpack.c.l.b16 %v221
    %v987 = vunpack.c.l.b16 %v222
    %v988 = vunpack.c.l.b16 %v223
    %v989 = vunpack.c.l.b16 %v224
    %v990 = vunpack.c.l.b16 %v225
    %v991 = vunpack.c.l.b16 %v226
    %v992 = vunpack.c.l.b16 %v227
    %v993 = vunpack.c.l.b16 %v228
    %v994 = vunpack.c.l.b16 %v229
    %v995 = vunpack.c.l.b16 %v230
    %v996 = vunpack.c.l.b16 %v231
    %v997 = vunpack.c.l.b16 %v232
    %v998 = vunpack.c.l.b16 %v233
    %v999 = vunpack.c.l.b16 %v234
    %v1000 = vunpack.c.l.b16 %v235
    %v1001 = vunpack.c.l.b16 %v236
    %v1002 = vunpack.c.l.b16 %v237
    %v1003 = vunpack.c.l.b16 %v238
    %v1004 = vunpack.c.l.b16 %v239
    %v1005 = vunpack.c.l.b16 %v240
    %v1006 = vunpack.c.l.b16 %v241
    %v1007 = vunpack.c.l.b16 %v242
    %v1008 = vunpack.c.l.b16 %v243
    %v1009 = vunpack.c.l.b16 %v244
    %v1010 = vunpack.c.l.b16 %v245
    %v1011 = vunpack.c.l.b16 %v246
    %v1012 = vunpack.c.l.b16 %v247
    %v1013 = vunpack.c.l.b16 %v248
    %v1014 = vunpack.c.l.b16 %v249
    %v1015 = vunpack.c.l.b16 %v250
    %v1016 = vunpack.c.l.b16 %v251
    %v1017 = vunpack.c.l.b16 %v252
    %v1018 = vunpack.c.l.b16 %v253
    %v1019 = vunpack.c.l.b16 %v254
    %v1020 = vunpack.c.l.b16 %v255
    %v1021 = vunpack.c.l.b16 %v256
    %v1022 = vunpack.c.l.b16 %v257
    %v1023 = vunpack.c.l.b16 %v258
    %v1024 = vunpack.c.l.b16 %v259
    %v1025 = vunpack.c.l.b16 %v260
    %v1026 = vunpack.c.l.b16 %v261
    %v1027 = vunpack.c.l.b16 %v262
    %v1028 = vunpack.c.l.b16 %v263
    %v1029 = vunpack.c.l.b16 %v264
    %v1030 = vunpack.c.l.b16 %v265
    %v1031 = vunpack.c.l.b16 %v266
    %v1032 = vunpack.c.l.b16 %v267
    %v1033 = vunpack.c.l.b16 %v268
    %v1034 = vunpack.c.l.b16 %v269
    %v1035 = vunpack.c.l.b16 %v270
    %v1036 = vunpack.c.l.b16 %v271
    %v1037 = vunpack.c.l.b16 %v272
    %v1038 = vunpack.c.l.b16 %v273
    %v1039 = vunpack.c.l.b16 %v274
    %v1040 = vunpack.c.l.b16 %v275
    %v1041 = vunpack.c.l.b16 %v276
    %v1042 = vunpack.c.l.b16 %v277
    %v1043 = vunpack.c.l.b16 %v278
    %v1044 = vunpack.c.l.b16 %v279
    %v1045 = vunpack.c.l.b16 %v280
    %v1046 = vunpack.c.l.b16 %v281
    %v1047 = vunpack.c.l.b16 %v282
    %v1048 = vunpack.c.l.b16 %v283
    %v1049 = vunpack.c.l.b16 %v284
    %v1050 = vunpack.c.l.b16 %v285
    %v1051 = vunpack.c.l.b16 %v286
    %v1052 = vunpack.c.l.b16 %v287
    %v1053 = vunpack.c.l.b16 %v288
    %v1054 = vunpack.c.l.b16 %v289
    %v1055 = vunpack.c.l.b16 %v290
    %v1056 = vunpack.c.l.b16 %v291
    %v1057 = vunpack.c.l.b16 %v292
    %v1058 = vunpack.c.l.b16 %v293
    %v1059 = vunpack.c.l.b16 %v294
    %v1060 = vunpack.c.l.b16 %v295
    %v1061 = vunpack.c.l.b16 %v296
    %v1062 = vunpack.c.l.b16 %v297
    %v1063 = vunpack.c.l.b16 %v298
    %v1064 = vunpack.c.l.b16 %v299
    %v1065 = vunpack.c.l.b16 %v300
    %v1066 = vunpack.c.l.b16 %v301
    %v1067 = vunpack.c.l.b16 %v302
    %v1068 = vunpack.c.l.b16 %v303
    %v1069 = vunpack.c.l.b16 %v304
    %v1070 = vunpack.c.l.b16 %v305
    %v1071 = vunpack.c.l.b16 %v306
    %v1072 = vunpack.c.l.b16 %v307
    %v1073 = vunpack.c.l.b16 %v308
    %v1074 = vunpack.c.l.b16 %v309
    %v1075 = vunpack.c.l.b16 %v310
    %v1076 = vunpack.c.l.b16 %v311
    %v1077 = vunpack.c.l.b16 %v312
    %v1078 = vunpack.c.l.b16 %v313
    %v1079 = vunpack.c.l.b16 %v314
    %v1080 = vunpack.c.l.b16 %v315
    %v1081 = vunpack.c.l.b16 %v316
    %v1082 = vunpack.c.l.b16 %v317
    %v1083 = vunpack.c.l.b16 %v318
    %v1084 = vunpack.c.l.b16 %v319
    %v1085 = vunpack.c.l.b16 %v320
    %v1086 = vunpack.c.l.b16 %v321
    %v1087 = vunpack.c.l.b16 %v322
    %v1088 = vunpack.c.l.b16 %v323
    %v1089 = vunpack.c.l.b16 %v324
    %v1090 = vunpack.c.l.b16 %v325
    %v1091 = vunpack.c.l.b16 %v326
    %v1092 = vunpack.c.l.b16 %v327
    %v1093 = vunpack.c.l.b16 %v328
    %v1094 = vunpack.c.l.b16 %v329
    %v1095 = vunpack.c.l.b16 %v330
    %v1096 = vunpack.c.l.b16 %v331
    %v1097 = vunpack.c.l.b16 %v332
    %v1098 = vunpack.c.l.b16 %v333
    %v1099 = vunpack.c.l.b16 %v334
    %v1100 = vunpack.c.l.b16 %v335
    %v1101 = vunpack.c.l.b16 %v336
    %v1102 = vunpack.c.l.b16 %v337
    %v1103 = vunpack.c.l.b16 %v338
    %v1104 = vunpack.c.l.b16 %v339
    %v1105 = vunpack.c.l.b16 %v340
    %v1106 = vunpack.c.l.b16 %v341
    %v1107 = vunpack.c.l.b16 %v342
    %v1108 = vunpack.c.l.b16 %v343
    %v1109 = vunpack.c.l.b16 %v344
    %v1110 = vunpack.c.l.b16 %v345
    %v1111 = vunpack.c.l.b16 %v346
    %v1112 = vunpack.c.l.b16 %v347
    %v1113 = vunpack.c.l.b16 %v348
    %v1114 = vunpack.c.l.b16 %v349
    %v1115 = vunpack.c.l.b16 %v350
    %v1116 = vunpack.c.l.b16 %v351
    %v1117 = vunpack.c.l.b16 %v352
    %v1118 = vunpack.c.l.b16 %v353
    %v1119 = vunpack.c.l.b16 %v354
    %v1120 = vunpack.c.l.b16 %v355
    %v1121 = vunpack.c.l.b16 %v356
    %v1122 = vunpack.c.l.b16 %v357
    %v1123 = vunpack.c.l.b16 %v358
    %v1124 = vunpack.c.l.b16 %v359
    %v1125 = vunpack.c.l.b16 %v360
    %v1126 = vunpack.c.l.b16 %v361
    %v1127 = vunpack.c.l.b16 %v362
    %v1128 = vunpack.c.l.b16 %v363
    %v1129 = vunpack.c.l.b16 %v364
    %v1130 = vunpack.c.l.b16 %v365
    %v1131 = vunpack.c.l.b16 %v366
    %v1132 = vunpack.c.l.b16 %v367
    %v1133 = vunpack.c.l.b16 %v368
    %v1134 = vunpack.c.l.b16 %v369
    %v1135 = vunpack.c.l.b16 %v370
    %v1136 = vunpack.c.l.b16 %v371
    %v1137 = vunpack.c.l.b16 %v372
    %v1138 = vunpack.c.l.b16 %v373
    %v1139 = vunpack.c.l.b16 %v374
    %v1140 = vunpack.c.l.b16 %v375
    %v1141 = vunpack.c.l.b16 %v376
    %v1142 = vunpack.c.l.b16 %v377
    %v1143 = vunpack.c.l.b16 %v378
    %v1144 = vunpack.c.l.b16 %v379
    %v1145 = vunpack.c.l.b16 %v380
    %v1146 = vunpack.c.l.b16 %v381
    %v1147 = vunpack.c.l.b16 %v382
    %v1148 = vunpack.c.l.b16 %v383
    %v1149 = vunpack.c.l.b16 %v384
    %v1150 = vunpack.c.l.b16 %v385
    %v1151 = vunpack.c.l.b16 %v386
    %v1152 = vunpack.c.l.b16 %v387
    %v1153 = vunpack.c.l.b16 %v388
    %v1154 = vunpack.c.l.b16 %v389
    %v1155 = vunpack.c.l.b16 %v390
    %v1156 = vunpack.c.l.b16 %v391
    %v1157 = vunpack.c.l.b16 %v392
    %v1158 = vunpack.c.l.b16 %v393
    %v1159 = vunpack.c.l.b16 %v394
    %v1160 = vunpack.c.l.b16 %v395
    %v1161 = vunpack.c.l.b16 %v396
    %v1162 = vunpack.c.l.b16 %v397
    %v1163 = vunpack.c.l.b16 %v398
    %v1164 = vunpack.c.l.b16 %v399
    %v1165 = vunpack.c.l.b16 %v400
    %v1166 = vunpack.c.l.b16 %v401
    %v1167 = vunpack.c.l.b16 %v402
    %v1168 = vunpack.c.l.b16 %v403
    %v1169 = vunpack.c.l.b16 %v404
    %v1170 = vunpack.c.l.b16 %v405
    %v1171 = vunpack.c.l.b16 %v406
    %v1172 = vunpack.c.l.b16 %v407
    %v1173 = vunpack.c.l.b16 %v408
    %v1174 = vunpack.c.l.b16 %v409
    %v1175 = vunpack.c.l.b16 %v410
    %v1176 = vunpack.c.l.b16 %v411
    %v1177 = vunpack.c.l.b16 %v412
    %v1178 = vunpack.c.l.b16 %v413
    %v1179 = vunpack.c.l.b16 %v414
    %v1180 = vunpack.c.l.b16 %v415
    %v1181 = vunpack.c.l.b16 %v416
    %v1182 = vunpack.c.l.b16 %v417
    %v1183 = vunpack.c.l.b16 %v418
    %v1184 = vunpack.c.l.b16 %v419
    %v1185 = vunpack.c.l.b16 %v420
    %v1186 = vunpack.c.l.b16 %v421
    %v1187 = vunpack.c.l.b16 %v422
    %v1188 = vunpack.c.l.b16 %v423
    %v1189 = vunpack.c.l.b16 %v424
    %v1190 = vunpack.c.l.b16 %v425
    %v1191 = vunpack.c.l.b16 %v426
    %v1192 = vunpack.c.l.b16 %v427
    %v1193 = vunpack.c.l.b16 %v428
    %v1194 = vunpack.c.l.b16 %v429
    %v1195 = vunpack.c.l.b16 %v430
    %v1196 = vunpack.c.l.b16 %v431
    %v1197 = vunpack.c.l.b16 %v432
    %v1198 = vunpack.c.l.b16 %v433
    %v1199 = vunpack.c.l.b16 %v434
    %v1200 = vunpack.c.l.b16 %v435
    %v1201 = vunpack.c.l.b16 %v436
    %v1202 = vunpack.c.l.b16 %v437
    %v1203 = vunpack.c.l.b16 %v438
    %v1204 = vunpack.c.l.b16 %v439
    %v1205 = vunpack.c.l.b16 %v440
    %v1206 = vunpack.c.l.b16 %v441
    %v1207 = vunpack.c.l.b16 %v442
    %v1208 = vunpack.c.l.b16 %v443
    %v1209 = vunpack.c.l.b16 %v444
    %v1210 = vunpack.c.l.b16 %v445
    %v1211 = vunpack.c.l.b16 %v446
    %v1212 = vunpack.c.l.b16 %v447
    %v1213 = vunpack.c.l.b16 %v448
    %v1214 = vunpack.c.l.b16 %v449
    %v1215 = vunpack.c.l.b16 %v450
    %v1216 = vunpack.c.l.b16 %v451
    %v1217 = vunpack.c.l.b16 %v452
    %v1218 = vunpack.c.l.b16 %v453
    %v1219 = vunpack.c.l.b16 %v454
    %v1220 = vunpack.c.l.b16 %v455
    %v1221 = vunpack.c.l.b16 %v456
    %v1222 = vunpack.c.l.b16 %v457
    %v1223 = vunpack.c.l.b16 %v458
    %v1224 = vunpack.c.l.b16 %v459
    %v1225 = vunpack.c.l.b16 %v460
    %v1226 = vunpack.c.l.b16 %v461
    %v1227 = vunpack.c.l.b16 %v462
    %v1228 = vunpack.c.l.b16 %v463
    %v1229 = vunpack.c.l.b16 %v464
    %v1230 = vunpack.c.l.b16 %v465
    %v1231 = vunpack.c.l.b16 %v466
    %v1232 = vunpack.c.l.b16 %v467
    %v1233 = vpack.c.b16 %v855, %v854
    %v1234 = vpack.c.b16 %v857, %v856
    %v1235 = vpack.c.b16 %v859, %v858
    %v1236 = vpack.c.b16 %v861, %v860
    %v1237 = vpack.c.b16 %v863, %v862
    %v1238 = vpack.c.b16 %v865, %v864
    %v1239 = vpack.c.b16 %v867, %v866
    %v1240 = vpack.c.b16 %v869, %v868
    %v1241 = vpack.c.b16 %v871, %v870
    %v1242 = vpack.c.b16 %v873, %v872
    %v1243 = vpack.c.b16 %v875, %v874
    %v1244 = vpack.c.b16 %v877, %v876
    %v1245 = vpack.c.b16 %v879, %v878
    %v1246 = vpack.c.b16 %v881, %v880
    %v1247 = vpack.c.b16 %v883, %v882
    %v1248 = vpack.c.b16 %v885, %v884
    %v1249 = vpack.c.b16 %v887, %v886
    %v1250 = vpack.c.b16 %v889, %v888
    %v1251 = vpack.c.b16 %v891, %v890
    %v1252 = vpack.c.b16 %v893, %v892
    %v1253 = vpack.c.b16 %v895, %v894
    %v1254 = vpack.c.b16 %v897, %v896
    %v1255 = vpack.c.b16 %v899, %v898
    %v1256 = vpack.c.b16 %v901, %v900
    %v1257 = vpack.c.b16 %v903, %v902
    %v1258 = vpack.c.b16 %v905, %v904
    %v1259 = vpack.c.b16 %v907, %v906
    %v1260 = vpack.c.b16 %v909, %v908
    %v1261 = vpack.c.b16 %v911, %v910
    %v1262 = vpack.c.b16 %v913, %v912
    %v1263 = vpack.c.b16 %v915, %v914
    %v1264 = vpack.c.b16 %v917, %v916
    %v1265 = vpack.c.b16 %v919, %v918
    %v1266 = vpack.c.b16 %v921, %v920
    %v1267 = vpack.c.b16 %v923, %v922
    %v1268 = vpack.c.b16 %v925, %v924
    %v1269 = vpack.c.b16 %v927, %v926
    %v1270 = vpack.c.b16 %v929, %v928
    %v1271 = vpack.c.b16 %v931, %v930
    %v1272 = vpack.c.b16 %v933, %v932
    %v1273 = vpack.c.b16 %v935, %v934
    %v1274 = vpack.c.b16 %v937, %v936
    %v1275 = vpack.c.b16 %v939, %v938
    %v1276 = vpack.c.b16 %v941, %v940
    %v1277 = vpack.c.b16 %v943, %v942
    %v1278 = vpack.c.b16 %v945, %v944
    %v1279 = vpack.c.b16 %v947, %v946
    %v1280 = vpack.c.b16 %v949, %v948
    %v1281 = vpack.c.b16 %v951, %v950
    %v1282 = vpack.c.b16 %v953, %v952
    %v1283 = vpack.c.b16 %v955, %v954
    %v1284 = vpack.c.b16 %v957, %v956
    %v1285 = vpack.c.b16 %v959, %v958
    %v1286 = vpack.c.b16 %v961, %v960
    %v1287 = vpack.c.b16 %v963, %v962
    %v1288 = vpack.c.b16 %v965, %v964
    %v1289 = vpack.c.b16 %v967, %v966
    %v1290 = vpack.c.b16 %v969, %v968
    %v1291 = vpack.c.b16 %v971, %v970
    %v1292 = vpack.c.b16 %v973, %v972
    %v1293 = vpack.c.b16 %v975, %v974
    %v1294 = vpack.c.b16 %v977, %v976
    %v1295 = vpack.c.b16 %v979, %v978
    %v1296 = vpack.c.b16 %v981, %v980
    %v1297 = vpack.c.b16 %v983, %v982
    %v1298 = vpack.c.b16 %v985, %v984
    %v1299 = vpack.c.b16 %v987, %v986
    %v1300 = vpack.c.b16 %v989, %v988
    %v1301 = vpack.c.b16 %v991, %v990
    %v1302 = vpack.c.b16 %v993, %v992
    %v1303 = vpack.c.b16 %v995, %v994
    %v1304 = vpack.c.b16 %v997, %v996
    %v1305 = vpack.c.b16 %v999, %v998
    %v1306 = vpack.c.b16 %v1001, %v1000
    %v1307 = vpack.c.b16 %v1003, %v1002
    %v1308 = vpack.c.b16 %v1005, %v1004
    %v1309 = vpack.c.b16 %v1007, %v1006
    %v1310 = vpack.c.b16 %v1009, %v1008
    %v1311 = vpack.c.b16 %v1011, %v1010
    %v1312 = vpack.c.b16 %v1013, %v1012
    %v1313 = vpack.c.b16 %v1015, %v1014
    %v1314 = vpack.c.b16 %v1017, %v1016
    %v1315 = vpack.c.b16 %v1019, %v1018
    %v1316 = vpack.c.b16 %v1021, %v1020
    %v1317 = vpack.c.b16 %v1023, %v1022
    %v1318 = vpack.c.b16 %v1025, %v1024
    %v1319 = vpack.c.b16 %v1027, %v1026
    %v1320 = vpack.c.b16 %v1029, %v1028
    %v1321 = vpack.c.b16 %v1031, %v1030
    %v1322 = vpack.c.b16 %v1033, %v1032
    %v1323 = vpack.c.b16 %v1035, %v1034
    %v1324 = vpack.c.b16 %v1037, %v1036
    %v1325 = vpack.c.b16 %v1039, %v1038
    %v1326 = vpack.c.b16 %v1041, %v1040
    %v1327 = vpack.c.b16 %v1043, %v1042
    %v1328 = vpack.c.b16 %v1045, %v1044
    %v1329 = vpack.c.b16 %v1047, %v1046
    %v1330 = vpack.c.b16 %v1049, %v1048
    %v1331 = vpack.c.b16 %v1051, %v1050
    %v1332 = vpack.c.b16 %v1053, %v1052
    %v1333 = vpack.c.b16 %v1055, %v1054
    %v1334 = vpack.c.b16 %v1057, %v1056
    %v1335 = vpack.c.b16 %v1059, %v1058
    %v1336 = vpack.c.b16 %v1061, %v1060
    %v1337 = vpack.c.b16 %v1063, %v1062
    %v1338 = vpack.c.b16 %v1065, %v1064
    %v1339 = vpack.c.b16 %v1067, %v1066
    %v1340 = vpack.c.b16 %v1069, %v1068
    %v1341 = vpack.c.b16 %v1071, %v1070
    %v1342 = vpack.c.b16 %v1073, %v1072
    %v1343 = vpack.c.b16 %v1075, %v1074
    %v1344 = vpack.c.b16 %v1077, %v1076
    %v1345 = vpack.c.b16 %v1079, %v1078
    %v1346 = vpack.c.b16 %v1081, %v1080
    %v1347 = vpack.c.b16 %v1083, %v1082
    %v1348 = vpack.c.b16 %v1085, %v1084
    %v1349 = vpack.c.b16 %v1087, %v1086
    %v1350 = vpack.c.b16 %v1089, %v1088
    %v1351 = vpack.c.b16 %v1091, %v1090
    %v1352 = vpack.c.b16 %v1093, %v1092
    %v1353 = vpack.c.b16 %v1095, %v1094
    %v1354 = vpack.c.b16 %v1097, %v1096
    %v1355 = vpack.c.b16 %v1099, %v1098
    %v1356 = vpack.c.b16 %v1101, %v1100
    %v1357 = vpack.c.b16 %v1103, %v1102
    %v1358 = vpack.c.b16 %v1105, %v1104
    %v1359 = vpack.c.b16 %v1107, %v1106
    %v1360 = vpack.c.b16 %v1109, %v1108
    %v1361 = vpack.c.b16 %v1111, %v1110
    %v1362 = vpack.c.b16 %v1113, %v1112
    %v1363 = vpack.c.b16 %v1115, %v1114
    %v1364 = vpack.c.b16 %v1117, %v1116
    %v1365 = vpack.c.b16 %v1119, %v1118
    %v1366 = vpack.c.b16 %v1121, %v1120
    %v1367 = vpack.c.b16 %v1123, %v1122
    %v1368 = vpack.c.b16 %v1125, %v1124
    %v1369 = vpack.c.b16 %v1127, %v1126
    %v1370 = vpack.c.b16 %v1129, %v1128
    %v1371 = vpack.c.b16 %v1131, %v1130
    %v1372 = vpack.c.b16 %v1133, %v1132
    %v1373 = vpack.c.b16 %v1135, %v1134
    %v1374 = vpack.c.b16 %v1137, %v1136
    %v1375 = vpack.c.b16 %v1139, %v1138
    %v1376 = vpack.c.b16 %v1141, %v1140
    %v1377 = vpack.c.b16 %v1143, %v1142
    %v1378 = vpack.c.b16 %v1145, %v1144
    %v1379 = vpack.c.b16 %v1147, %v1146
    %v1380 = vpack.c.b16 %v1149, %v1148
    %v1381 = vpack.c.b16 %v1151, %v1150
    %v1382 = vpack.c.b16 %v1153, %v1152
    %v1383 = vpack.c.b16 %v1155, %v1154
    %v1384 = vpack.c.b16 %v1157, %v1156
    %v1385 = vpack.c.b16 %v1159, %v1158
    %v1386 = vpack.c.b16 %v1161, %v1160
    %v1387 = vpack.c.b16 %v1163, %v1162
    %v1388 = vpack.c.b16 %v1165, %v1164
    %v1389 = vpack.c.b16 %v1167, %v1166
    %v1390 = vpack.c.b16 %v1169, %v1168
    %v1391 = vpack.c.b16 %v1171, %v1170
    %v1392 = vpack.c.b16 %v1173, %v1172
    %v1393 = vpack.c.b16 %v1175, %v1174
    %v1394 = vpack.c.b16 %v1177, %v1176
    %v1395 = vpack.c.b16 %v1179, %v1178
    %v1396 = vpack.c.b16 %v1181, %v1180
    %v1397 = vpack.c.b16 %v1183, %v1182
    %v1398 = vpack.c.b16 %v1185, %v1184
    %v1399 = vpack.c.b16 %v1187, %v1186
    %v1400 = vpack.c.b16 %v1189, %v1188
    %v1401 = vpack.c.b16 %v1191, %v1190
    %v1402 = vpack.c.b16 %v1193, %v1192
    %v1403 = vpack.c.b16 %v1195, %v1194
    %v1404 = vpack.c.b16 %v1197, %v1196
    %v1405 = vpack.c.b16 %v1199, %v1198
    %v1406 = vpack.c.b16 %v1201, %v1200
    %v1407 = vpack.c.b16 %v1203, %v1202
    %v1408 = vpack.c.b16 %v1205, %v1204
    %v1409 = vpack.c.b16 %v1207, %v1206
    %v1410 = vpack.c.b16 %v1209, %v1208
    %v1411 = vpack.c.b16 %v1211, %v1210
    %v1412 = vpack.c.b16 %v1213, %v1212
    %v1413 = vpack.c.b16 %v1215, %v1214
    %v1414 = vpack.c.b16 %v1217, %v1216
    %v1415 = vpack.c.b16 %v1219, %v1218
    %v1416 = vpack.c.b16 %v1221, %v1220
    %v1417 = vpack.c.b16 %v1223, %v1222
    %v1418 = vpack.c.b16 %v1225, %v1224
    %v1419 = vpack.c.b16 %v1227, %v1226
    %v1420 = vpack.c.b16 %v1229, %v1228
    %v1421 = vpack.c.b16 %v1231, %v1230
    %v1422 = vpack.c.b16 %v1232, %v1232
    %vm1612 = vcmask 687104
    %v1614 = vsel %vm1612, %v88, 0
    %vm1616 = vcmask 1041408
    %v1618 = vsel %vm1616, %v1422, 0
    %1620 = vmatprep.subr.bf16.mxu0 0
    %1621 = vmatpush1.bf16.msra.mxu0 %v1233
    %1622 = vmatprep.subr.bf16.mxu0 0
    %1623 = vmatpush1.bf16.msra.mxu0 %v1234
    %1624 = vmatprep.subr.bf16.mxu0 0
    %1625 = vmatpush1.bf16.msra.mxu0 %v1235
    %1626 = vmatprep.subr.bf16.mxu0 0
    %1627 = vmatpush1.bf16.msra.mxu0 %v1236
    %1628 = vmatprep.subr.bf16.mxu0 0
    %1629 = vmatpush1.bf16.msra.mxu0 %v1237
    %1630 = vmatprep.subr.bf16.mxu0 0
    %1631 = vmatpush1.bf16.msra.mxu0 %v1238
    %1632 = vmatprep.subr.bf16.mxu0 0
    %1633 = vmatpush1.bf16.msra.mxu0 %v1239
    %1634 = vmatprep.subr.bf16.mxu0 0
    %1635 = vmatpush1.bf16.msra.mxu0 %v1240
    %1636 = vmatprep.subr.bf16.mxu0 0
    %1637 = vmatpush1.bf16.msra.mxu0 %v1241
    %1638 = vmatprep.subr.bf16.mxu0 0
    %1639 = vmatpush1.bf16.msra.mxu0 %v1242
    %1640 = vmatprep.subr.bf16.mxu0 0
    %1641 = vmatpush1.bf16.msra.mxu0 %v1243
    %1642 = vmatprep.subr.bf16.mxu0 0
    %1643 = vmatpush1.bf16.msra.mxu0 %v1244
    %1644 = vmatprep.subr.bf16.mxu0 0
    %1645 = vmatpush1.bf16.msra.mxu0 %v1245
    %1646 = vmatprep.subr.bf16.mxu0 0
    %1647 = vmatpush1.bf16.msra.mxu0 %v1246
    %1648 = vmatprep.subr.bf16.mxu0 0
    %1649 = vmatpush1.bf16.msra.mxu0 %v1247
    %1650 = vmatprep.subr.bf16.mxu0 0
    %1651 = vmatpush1.bf16.msra.mxu0 %v1248
    %1652 = vmatprep.mubr.bf16.mxu0 %v66
    %1653 = vmatmul.mubr.bf16.gmra.mrb[0].mxu0 %v65
    %v1654 = vpop.f32.mrb[0].mxu0
    %v1655 = vadd.f32 %v473, %v1654
    %v1656 = vpop.f32.mrb[0].mxu0
    %v1657 = vpop.f32.mrb[0].mxu0
    %v1658 = vpop.f32.mrb[0].mxu0
    %1659 = vdwg.mxu0
    %1660 = vmatprep.subr.bf16.mxu0 0
    %1661 = vmatpush1.bf16.msra.mxu0 %v1249
    %1662 = vmatprep.subr.bf16.mxu0 0
    %1663 = vmatpush1.bf16.msra.mxu0 %v1250
    %1664 = vmatprep.subr.bf16.mxu0 0
    %1665 = vmatpush1.bf16.msra.mxu0 %v1251
    %1666 = vmatprep.subr.bf16.mxu0 0
    %1667 = vmatpush1.bf16.msra.mxu0 %v1252
    %1668 = vmatprep.subr.bf16.mxu0 0
    %1669 = vmatpush1.bf16.msra.mxu0 %v1253
    %1670 = vmatprep.subr.bf16.mxu0 0
    %1671 = vmatpush1.bf16.msra.mxu0 %v1254
    %1672 = vmatprep.subr.bf16.mxu0 0
    %1673 = vmatpush1.bf16.msra.mxu0 %v1255
    %1674 = vmatprep.subr.bf16.mxu0 0
    %1675 = vmatpush1.bf16.msra.mxu0 %v1256
    %1676 = vmatprep.subr.bf16.mxu0 0
    %1677 = vmatpush1.bf16.msra.mxu0 %v1257
    %1678 = vmatprep.subr.bf16.mxu0 0
    %1679 = vmatpush1.bf16.msra.mxu0 %v1258
    %1680 = vmatprep.subr.bf16.mxu0 0
    %1681 = vmatpush1.bf16.msra.mxu0 %v1259
    %1682 = vmatprep.subr.bf16.mxu0 0
    %1683 = vmatpush1.bf16.msra.mxu0 %v1260
    %1684 = vmatprep.subr.bf16.mxu0 0
    %1685 = vmatpush1.bf16.msra.mxu0 %v1261
    %1686 = vmatprep.subr.bf16.mxu0 0
    %1687 = vmatpush1.bf16.msra.mxu0 %v1262
    %1688 = vmatprep.subr.bf16.mxu0 0
    %1689 = vmatpush1.bf16.msra.mxu0 %v1263
    %1690 = vmatprep.subr.bf16.mxu0 0
    %1691 = vmatpush1.bf16.msra.mxu0 %v1264
    %1692 = vmatprep.mubr.bf16.mxu0 %v68
    %1693 = vmatmul.mubr.bf16.gmra.mrb[0].mxu0 %v67
    %v1694 = vpop.f32.mrb[0].mxu0
    %v1695 = vadd.f32 %v1655, %v1694
    %v1696 = vpop.f32.mrb[0].mxu0
    %v1697 = vpop.f32.mrb[0].mxu0
    %v1698 = vpop.f32.mrb[0].mxu0
    %1699 = vdwg.mxu0
    %1700 = vmatprep.subr.bf16.mxu0 0
    %1701 = vmatpush1.bf16.msra.mxu0 %v1265
    %1702 = vmatprep.subr.bf16.mxu0 0
    %1703 = vmatpush1.bf16.msra.mxu0 %v1266
    %1704 = vmatprep.subr.bf16.mxu0 0
    %1705 = vmatpush1.bf16.msra.mxu0 %v1267
    %1706 = vmatprep.subr.bf16.mxu0 0
    %1707 = vmatpush1.bf16.msra.mxu0 %v1268
    %1708 = vmatprep.subr.bf16.mxu0 0
    %1709 = vmatpush1.bf16.msra.mxu0 %v1269
    %1710 = vmatprep.subr.bf16.mxu0 0
    %1711 = vmatpush1.bf16.msra.mxu0 %v1270
    %1712 = vmatprep.subr.bf16.mxu0 0
    %1713 = vmatpush1.bf16.msra.mxu0 %v1271
    %1714 = vmatprep.subr.bf16.mxu0 0
    %1715 = vmatpush1.bf16.msra.mxu0 %v1272
    %1716 = vmatprep.subr.bf16.mxu0 0
    %1717 = vmatpush1.bf16.msra.mxu0 %v1273
    %1718 = vmatprep.subr.bf16.mxu0 0
    %1719 = vmatpush1.bf16.msra.mxu0 %v1274
    %1720 = vmatprep.subr.bf16.mxu0 0
    %1721 = vmatpush1.bf16.msra.mxu0 %v1275
    %1722 = vmatprep.subr.bf16.mxu0 0
    %1723 = vmatpush1.bf16.msra.mxu0 %v1276
    %1724 = vmatprep.subr.bf16.mxu0 0
    %1725 = vmatpush1.bf16.msra.mxu0 %v1277
    %1726 = vmatprep.subr.bf16.mxu0 0
    %1727 = vmatpush1.bf16.msra.mxu0 %v1278
    %1728 = vmatprep.subr.bf16.mxu0 0
    %1729 = vmatpush1.bf16.msra.mxu0 %v1279
    %1730 = vmatprep.subr.bf16.mxu0 0
    %1731 = vmatpush1.bf16.msra.mxu0 %v1280
    %1732 = vmatprep.mubr.bf16.mxu0 %v70
    %1733 = vmatmul.mubr.bf16.gmra.mrb[0].mxu0 %v69
    %v1734 = vpop.f32.mrb[0].mxu0
    %v1735 = vadd.f32 %v1695, %v1734
    %v1736 = vpop.f32.mrb[0].mxu0
    %v1737 = vpop.f32.mrb[0].mxu0
    %v1738 = vpop.f32.mrb[0].mxu0
    %1739 = vdwg.mxu0
    %1740 = vmatprep.subr.bf16.mxu0 0
    %1741 = vmatpush1.bf16.msra.mxu0 %v1281
    %1742 = vmatprep.subr.bf16.mxu0 0
    %1743 = vmatpush1.bf16.msra.mxu0 %v1282
    %1744 = vmatprep.subr.bf16.mxu0 0
    %1745 = vmatpush1.bf16.msra.mxu0 %v1283
    %1746 = vmatprep.subr.bf16.mxu0 0
    %1747 = vmatpush1.bf16.msra.mxu0 %v1284
    %1748 = vmatprep.subr.bf16.mxu0 0
    %1749 = vmatpush1.bf16.msra.mxu0 %v1285
    %1750 = vmatprep.subr.bf16.mxu0 0
    %1751 = vmatpush1.bf16.msra.mxu0 %v1286
    %1752 = vmatprep.subr.bf16.mxu0 0
    %1753 = vmatpush1.bf16.msra.mxu0 %v1287
    %1754 = vmatprep.subr.bf16.mxu0 0
    %1755 = vmatpush1.bf16.msra.mxu0 %v1288
    %1756 = vmatprep.subr.bf16.mxu0 0
    %1757 = vmatpush1.bf16.msra.mxu0 %v1289
    %1758 = vmatprep.subr.bf16.mxu0 0
    %1759 = vmatpush1.bf16.msra.mxu0 %v1290
    %1760 = vmatprep.subr.bf16.mxu0 0
    %1761 = vmatpush1.bf16.msra.mxu0 %v1291
    %1762 = vmatprep.subr.bf16.mxu0 0
    %1763 = vmatpush1.bf16.msra.mxu0 %v1292
    %1764 = vmatprep.subr.bf16.mxu0 0
    %1765 = vmatpush1.bf16.msra.mxu0 %v1293
    %1766 = vmatprep.subr.bf16.mxu0 0
    %1767 = vmatpush1.bf16.msra.mxu0 %v1294
    %1768 = vmatprep.subr.bf16.mxu0 0
    %1769 = vmatpush1.bf16.msra.mxu0 %v1295
    %1770 = vmatprep.subr.bf16.mxu0 0
    %1771 = vmatpush1.bf16.msra.mxu0 %v1296
    %1772 = vmatprep.mubr.bf16.mxu0 %v72
    %1773 = vmatmul.mubr.bf16.gmra.mrb[0].mxu0 %v71
    %v1774 = vpop.f32.mrb[0].mxu0
    %v1775 = vadd.f32 %v1735, %v1774
    %v1776 = vpop.f32.mrb[0].mxu0
    %v1777 = vpop.f32.mrb[0].mxu0
    %v1778 = vpop.f32.mrb[0].mxu0
    %1779 = vdwg.mxu0
    %1780 = vmatprep.subr.bf16.mxu0 0
    %1781 = vmatpush1.bf16.msra.mxu0 %v1297
    %1782 = vmatprep.subr.bf16.mxu0 0
    %1783 = vmatpush1.bf16.msra.mxu0 %v1298
    %1784 = vmatprep.subr.bf16.mxu0 0
    %1785 = vmatpush1.bf16.msra.mxu0 %v1299
    %1786 = vmatprep.subr.bf16.mxu0 0
    %1787 = vmatpush1.bf16.msra.mxu0 %v1300
    %1788 = vmatprep.subr.bf16.mxu0 0
    %1789 = vmatpush1.bf16.msra.mxu0 %v1301
    %1790 = vmatprep.subr.bf16.mxu0 0
    %1791 = vmatpush1.bf16.msra.mxu0 %v1302
    %1792 = vmatprep.subr.bf16.mxu0 0
    %1793 = vmatpush1.bf16.msra.mxu0 %v1303
    %1794 = vmatprep.subr.bf16.mxu0 0
    %1795 = vmatpush1.bf16.msra.mxu0 %v1304
    %1796 = vmatprep.subr.bf16.mxu0 0
    %1797 = vmatpush1.bf16.msra.mxu0 %v1305
    %1798 = vmatprep.subr.bf16.mxu0 0
    %1799 = vmatpush1.bf16.msra.mxu0 %v1306
    %1800 = vmatprep.subr.bf16.mxu0 0
    %1801 = vmatpush1.bf16.msra.mxu0 %v1307
    %1802 = vmatprep.subr.bf16.mxu0 0
    %1803 = vmatpush1.bf16.msra.mxu0 %v1308
    %1804 = vmatprep.subr.bf16.mxu0 0
    %1805 = vmatpush1.bf16.msra.mxu0 %v1309
    %1806 = vmatprep.subr.bf16.mxu0 0
    %1807 = vmatpush1.bf16.msra.mxu0 %v1310
    %1808 = vmatprep.subr.bf16.mxu0 0
    %1809 = vmatpush1.bf16.msra.mxu0 %v1311
    %1810 = vmatprep.subr.bf16.mxu0 0
    %1811 = vmatpush1.bf16.msra.mxu0 %v1312
    %1812 = vmatprep.mubr.bf16.mxu0 %v74
    %1813 = vmatmul.mubr.bf16.gmra.mrb[0].mxu0 %v73
    %v1814 = vpop.f32.mrb[0].mxu0
    %v1815 = vadd.f32 %v1775, %v1814
    %v1816 = vpop.f32.mrb[0].mxu0
    %v1817 = vpop.f32.mrb[0].mxu0
    %v1818 = vpop.f32.mrb[0].mxu0
    %1819 = vdwg.mxu0
    %1820 = vmatprep.subr.bf16.mxu0 0
    %1821 = vmatpush1.bf16.msra.mxu0 %v1313
    %1822 = vmatprep.subr.bf16.mxu0 0
    %1823 = vmatpush1.bf16.msra.mxu0 %v1314
    %1824 = vmatprep.subr.bf16.mxu0 0
    %1825 = vmatpush1.bf16.msra.mxu0 %v1315
    %1826 = vmatprep.subr.bf16.mxu0 0
    %1827 = vmatpush1.bf16.msra.mxu0 %v1316
    %1828 = vmatprep.subr.bf16.mxu0 0
    %1829 = vmatpush1.bf16.msra.mxu0 %v1317
    %1830 = vmatprep.subr.bf16.mxu0 0
    %1831 = vmatpush1.bf16.msra.mxu0 %v1318
    %1832 = vmatprep.subr.bf16.mxu0 0
    %1833 = vmatpush1.bf16.msra.mxu0 %v1319
    %1834 = vmatprep.subr.bf16.mxu0 0
    %1835 = vmatpush1.bf16.msra.mxu0 %v1320
    %1836 = vmatprep.subr.bf16.mxu0 0
    %1837 = vmatpush1.bf16.msra.mxu0 %v1321
    %1838 = vmatprep.subr.bf16.mxu0 0
    %1839 = vmatpush1.bf16.msra.mxu0 %v1322
    %1840 = vmatprep.subr.bf16.mxu0 0
    %1841 = vmatpush1.bf16.msra.mxu0 %v1323
    %1842 = vmatprep.subr.bf16.mxu0 0
    %1843 = vmatpush1.bf16.msra.mxu0 %v1324
    %1844 = vmatprep.subr.bf16.mxu0 0
    %1845 = vmatpush1.bf16.msra.mxu0 %v1325
    %1846 = vmatprep.subr.bf16.mxu0 0
    %1847 = vmatpush1.bf16.msra.mxu0 %v1326
    %1848 = vmatprep.subr.bf16.mxu0 0
    %1849 = vmatpush1.bf16.msra.mxu0 %v1327
    %1850 = vmatprep.subr.bf16.mxu0 0
    %1851 = vmatpush1.bf16.msra.mxu0 %v1328
    %1852 = vmatprep.mubr.bf16.mxu0 %v76
    %1853 = vmatmul.mubr.bf16.gmra.mrb[0].mxu0 %v75
    %v1854 = vpop.f32.mrb[0].mxu0
    %v1855 = vadd.f32 %v1815, %v1854
    %v1856 = vpop.f32.mrb[0].mxu0
    %v1857 = vpop.f32.mrb[0].mxu0
    %v1858 = vpop.f32.mrb[0].mxu0
    %1859 = vdwg.mxu0
    %1860 = vmatprep.subr.bf16.mxu0 0
    %1861 = vmatpush1.bf16.msra.mxu0 %v1329
    %1862 = vmatprep.subr.bf16.mxu0 0
    %1863 = vmatpush1.bf16.msra.mxu0 %v1330
    %1864 = vmatprep.subr.bf16.mxu0 0
    %1865 = vmatpush1.bf16.msra.mxu0 %v1331
    %1866 = vmatprep.subr.bf16.mxu0 0
    %1867 = vmatpush1.bf16.msra.mxu0 %v1332
    %1868 = vmatprep.subr.bf16.mxu0 0
    %1869 = vmatpush1.bf16.msra.mxu0 %v1333
    %1870 = vmatprep.subr.bf16.mxu0 0
    %1871 = vmatpush1.bf16.msra.mxu0 %v1334
    %1872 = vmatprep.subr.bf16.mxu0 0
    %1873 = vmatpush1.bf16.msra.mxu0 %v1335
    %1874 = vmatprep.subr.bf16.mxu0 0
    %1875 = vmatpush1.bf16.msra.mxu0 %v1336
    %1876 = vmatprep.subr.bf16.mxu0 0
    %1877 = vmatpush1.bf16.msra.mxu0 %v1337
    %1878 = vmatprep.subr.bf16.mxu0 0
    %1879 = vmatpush1.bf16.msra.mxu0 %v1338
    %1880 = vmatprep.subr.bf16.mxu0 0
    %1881 = vmatpush1.bf16.msra.mxu0 %v1339
    %1882 = vmatprep.subr.bf16.mxu0 0
    %1883 = vmatpush1.bf16.msra.mxu0 %v1340
    %1884 = vmatprep.subr.bf16.mxu0 0
    %1885 = vmatpush1.bf16.msra.mxu0 %v1341
    %1886 = vmatprep.subr.bf16.mxu0 0
    %1887 = vmatpush1.bf16.msra.mxu0 %v1342
    %1888 = vmatprep.subr.bf16.mxu0 0
    %1889 = vmatpush1.bf16.msra.mxu0 %v1343
    %1890 = vmatprep.subr.bf16.mxu0 0
    %1891 = vmatpush1.bf16.msra.mxu0 %v1344
    %1892 = vmatprep.mubr.bf16.mxu0 %v78
    %1893 = vmatmul.mubr.bf16.gmra.mrb[0].mxu0 %v77
    %v1894 = vpop.f32.mrb[0].mxu0
    %v1895 = vadd.f32 %v1855, %v1894
    %v1896 = vpop.f32.mrb[0].mxu0
    %v1897 = vpop.f32.mrb[0].mxu0
    %v1898 = vpop.f32.mrb[0].mxu0
    %1899 = vdwg.mxu0
    %1900 = vmatprep.subr.bf16.mxu0 0
    %1901 = vmatpush1.bf16.msra.mxu0 %v1345
    %1902 = vmatprep.subr.bf16.mxu0 0
    %1903 = vmatpush1.bf16.msra.mxu0 %v1346
    %1904 = vmatprep.subr.bf16.mxu0 0
    %1905 = vmatpush1.bf16.msra.mxu0 %v1347
    %1906 = vmatprep.subr.bf16.mxu0 0
    %1907 = vmatpush1.bf16.msra.mxu0 %v1348
    %1908 = vmatprep.subr.bf16.mxu0 0
    %1909 = vmatpush1.bf16.msra.mxu0 %v1349
    %1910 = vmatprep.subr.bf16.mxu0 0
    %1911 = vmatpush1.bf16.msra.mxu0 %v1350
    %1912 = vmatprep.subr.bf16.mxu0 0
    %1913 = vmatpush1.bf16.msra.mxu0 %v1351
    %1914 = vmatprep.subr.bf16.mxu0 0
    %1915 = vmatpush1.bf16.msra.mxu0 %v1352
    %1916 = vmatprep.subr.bf16.mxu0 0
    %1917 = vmatpush1.bf16.msra.mxu0 %v1353
    %1918 = vmatprep.subr.bf16.mxu0 0
    %1919 = vmatpush1.bf16.msra.mxu0 %v1354
    %1920 = vmatprep.subr.bf16.mxu0 0
    %1921 = vmatpush1.bf16.msra.mxu0 %v1355
    %1922 = vmatprep.subr.bf16.mxu0 0
    %1923 = vmatpush1.bf16.msra.mxu0 %v1356
    %1924 = vmatprep.subr.bf16.mxu0 0
    %1925 = vmatpush1.bf16.msra.mxu0 %v1357
    %1926 = vmatprep.subr.bf16.mxu0 0
    %1927 = vmatpush1.bf16.msra.mxu0 %v1358
    %1928 = vmatprep.subr.bf16.mxu0 0
    %1929 = vmatpush1.bf16.msra.mxu0 %v1359
    %1930 = vmatprep.subr.bf16.mxu0 0
    %1931 = vmatpush1.bf16.msra.mxu0 %v1360
    %1932 = vmatprep.mubr.bf16.mxu0 %v80
    %1933 = vmatmul.mubr.bf16.gmra.mrb[0].mxu0 %v79
    %v1934 = vpop.f32.mrb[0].mxu0
    %v1935 = vadd.f32 %v1895, %v1934
    %v1936 = vpop.f32.mrb[0].mxu0
    %v1937 = vpop.f32.mrb[0].mxu0
    %v1938 = vpop.f32.mrb[0].mxu0
    %1939 = vdwg.mxu0
    %1940 = vmatprep.subr.bf16.mxu0 0
    %1941 = vmatpush1.bf16.msra.mxu0 %v1361
    %1942 = vmatprep.subr.bf16.mxu0 0
    %1943 = vmatpush1.bf16.msra.mxu0 %v1362
    %1944 = vmatprep.subr.bf16.mxu0 0
    %1945 = vmatpush1.bf16.msra.mxu0 %v1363
    %1946 = vmatprep.subr.bf16.mxu0 0
    %1947 = vmatpush1.bf16.msra.mxu0 %v1364
    %1948 = vmatprep.subr.bf16.mxu0 0
    %1949 = vmatpush1.bf16.msra.mxu0 %v1365
    %1950 = vmatprep.subr.bf16.mxu0 0
    %1951 = vmatpush1.bf16.msra.mxu0 %v1366
    %1952 = vmatprep.subr.bf16.mxu0 0
    %1953 = vmatpush1.bf16.msra.mxu0 %v1367
    %1954 = vmatprep.subr.bf16.mxu0 0
    %1955 = vmatpush1.bf16.msra.mxu0 %v1368
    %1956 = vmatprep.subr.bf16.mxu0 0
    %1957 = vmatpush1.bf16.msra.mxu0 %v1369
    %1958 = vmatprep.subr.bf16.mxu0 0
    %1959 = vmatpush1.bf16.msra.mxu0 %v1370
    %1960 = vmatprep.subr.bf16.mxu0 0
    %1961 = vmatpush1.bf16.msra.mxu0 %v1371
    %1962 = vmatprep.subr.bf16.mxu0 0
    %1963 = vmatpush1.bf16.msra.mxu0 %v1372
    %1964 = vmatprep.subr.bf16.mxu0 0
    %1965 = vmatpush1.bf16.msra.mxu0 %v1373
    %1966 = vmatprep.subr.bf16.mxu0 0
    %1967 = vmatpush1.bf16.msra.mxu0 %v1374
    %1968 = vmatprep.subr.bf16.mxu0 0
    %1969 = vmatpush1.bf16.msra.mxu0 %v1375
    %1970 = vmatprep.subr.bf16.mxu0 0
    %1971 = vmatpush1.bf16.msra.mxu0 %v1376
    %1972 = vmatprep.mubr.bf16.mxu0 %v82
    %1973 = vmatmul.mubr.bf16.gmra.mrb[0].mxu0 %v81
    %v1974 = vpop.f32.mrb[0].mxu0
    %v1975 = vadd.f32 %v1935, %v1974
    %v1976 = vpop.f32.mrb[0].mxu0
    %v1977 = vpop.f32.mrb[0].mxu0
    %v1978 = vpop.f32.mrb[0].mxu0
    %1979 = vdwg.mxu0
    %1980 = vmatprep.subr.bf16.mxu0 0
    %1981 = vmatpush1.bf16.msra.mxu0 %v1377
    %1982 = vmatprep.subr.bf16.mxu0 0
    %1983 = vmatpush1.bf16.msra.mxu0 %v1378
    %1984 = vmatprep.subr.bf16.mxu0 0
    %1985 = vmatpush1.bf16.msra.mxu0 %v1379
    %1986 = vmatprep.subr.bf16.mxu0 0
    %1987 = vmatpush1.bf16.msra.mxu0 %v1380
    %1988 = vmatprep.subr.bf16.mxu0 0
    %1989 = vmatpush1.bf16.msra.mxu0 %v1381
    %1990 = vmatprep.subr.bf16.mxu0 0
    %1991 = vmatpush1.bf16.msra.mxu0 %v1382
    %1992 = vmatprep.subr.bf16.mxu0 0
    %1993 = vmatpush1.bf16.msra.mxu0 %v1383
    %1994 = vmatprep.subr.bf16.mxu0 0
    %1995 = vmatpush1.bf16.msra.mxu0 %v1384
    %1996 = vmatprep.subr.bf16.mxu0 0
    %1997 = vmatpush1.bf16.msra.mxu0 %v1385
    %1998 = vmatprep.subr.bf16.mxu0 0
    %1999 = vmatpush1.bf16.msra.mxu0 %v1386
    %2000 = vmatprep.subr.bf16.mxu0 0
    %2001 = vmatpush1.bf16.msra.mxu0 %v1387
    %2002 = vmatprep.subr.bf16.mxu0 0
    %2003 = vmatpush1.bf16.msra.mxu0 %v1388
    %2004 = vmatprep.subr.bf16.mxu0 0
    %2005 = vmatpush1.bf16.msra.mxu0 %v1389
    %2006 = vmatprep.subr.bf16.mxu0 0
    %2007 = vmatpush1.bf16.msra.mxu0 %v1390
    %2008 = vmatprep.subr.bf16.mxu0 0
    %2009 = vmatpush1.bf16.msra.mxu0 %v1391
    %2010 = vmatprep.subr.bf16.mxu0 0
    %2011 = vmatpush1.bf16.msra.mxu0 %v1392
    %2012 = vmatprep.mubr.bf16.mxu0 %v84
    %2013 = vmatmul.mubr.bf16.gmra.mrb[0].mxu0 %v83
    %v2014 = vpop.f32.mrb[0].mxu0
    %v2015 = vadd.f32 %v1975, %v2014
    %v2016 = vpop.f32.mrb[0].mxu0
    %v2017 = vpop.f32.mrb[0].mxu0
    %v2018 = vpop.f32.mrb[0].mxu0
    %2019 = vdwg.mxu0
    %2020 = vmatprep.subr.bf16.mxu0 0
    %2021 = vmatpush1.bf16.msra.mxu0 %v1393
    %2022 = vmatprep.subr.bf16.mxu0 0
    %2023 = vmatpush1.bf16.msra.mxu0 %v1394
    %2024 = vmatprep.subr.bf16.mxu0 0
    %2025 = vmatpush1.bf16.msra.mxu0 %v1395
    %2026 = vmatprep.subr.bf16.mxu0 0
    %2027 = vmatpush1.bf16.msra.mxu0 %v1396
    %2028 = vmatprep.subr.bf16.mxu0 0
    %2029 = vmatpush1.bf16.msra.mxu0 %v1397
    %2030 = vmatprep.subr.bf16.mxu0 0
    %2031 = vmatpush1.bf16.msra.mxu0 %v1398
    %2032 = vmatprep.subr.bf16.mxu0 0
    %2033 = vmatpush1.bf16.msra.mxu0 %v1399
    %2034 = vmatprep.subr.bf16.mxu0 0
    %2035 = vmatpush1.bf16.msra.mxu0 %v1400
    %2036 = vmatprep.subr.bf16.mxu0 0
    %2037 = vmatpush1.bf16.msra.mxu0 %v1401
    %2038 = vmatprep.subr.bf16.mxu0 0
    %2039 = vmatpush1.bf16.msra.mxu0 %v1402
    %2040 = vmatprep.subr.bf16.mxu0 0
    %2041 = vmatpush1.bf16.msra.mxu0 %v1403
    %2042 = vmatprep.subr.bf16.mxu0 0
    %2043 = vmatpush1.bf16.msra.mxu0 %v1404
    %2044 = vmatprep.subr.bf16.mxu0 0
    %2045 = vmatpush1.bf16.msra.mxu0 %v1405
    %2046 = vmatprep.subr.bf16.mxu0 0
    %2047 = vmatpush1.bf16.msra.mxu0 %v1406
    %2048 = vmatprep.subr.bf16.mxu0 0
    %2049 = vmatpush1.bf16.msra.mxu0 %v1407
    %2050 = vmatprep.subr.bf16.mxu0 0
    %2051 = vmatpush1.bf16.msra.mxu0 %v1408
    %2052 = vmatprep.mubr.bf16.mxu0 %v86
    %2053 = vmatmul.mubr.bf16.gmra.mrb[0].mxu0 %v85
    %v2054 = vpop.f32.mrb[0].mxu0
    %v2055 = vadd.f32 %v2015, %v2054
    %v2056 = vpop.f32.mrb[0].mxu0
    %v2057 = vpop.f32.mrb[0].mxu0
    %v2058 = vpop.f32.mrb[0].mxu0
    %2059 = vdwg.mxu0
    %2060 = vmatprep.subr.bf16.mxu0 0
    %2061 = vmatpush1.bf16.msra.mxu0 %v1409
    %2062 = vmatprep.subr.bf16.mxu0 0
    %2063 = vmatpush1.bf16.msra.mxu0 %v1410
    %2064 = vmatprep.subr.bf16.mxu0 0
    %2065 = vmatpush1.bf16.msra.mxu0 %v1411
    %2066 = vmatprep.subr.bf16.mxu0 0
    %2067 = vmatpush1.bf16.msra.mxu0 %v1412
    %2068 = vmatprep.subr.bf16.mxu0 0
    %2069 = vmatpush1.bf16.msra.mxu0 %v1413
    %2070 = vmatprep.subr.bf16.mxu0 0
    %2071 = vmatpush1.bf16.msra.mxu0 %v1414
    %2072 = vmatprep.subr.bf16.mxu0 0
    %2073 = vmatpush1.bf16.msra.mxu0 %v1415
    %2074 = vmatprep.subr.bf16.mxu0 0
    %2075 = vmatpush1.bf16.msra.mxu0 %v1416
    %2076 = vmatprep.subr.bf16.mxu0 0
    %2077 = vmatpush1.bf16.msra.mxu0 %v1417
    %2078 = vmatprep.subr.bf16.mxu0 0
    %2079 = vmatpush1.bf16.msra.mxu0 %v1418
    %2080 = vmatprep.subr.bf16.mxu0 0
    %2081 = vmatpush1.bf16.msra.mxu0 %v1419
    %2082 = vmatprep.subr.bf16.mxu0 0
    %2083 = vmatpush1.bf16.msra.mxu0 %v1420
    %2084 = vmatprep.subr.bf16.mxu0 0
    %2085 = vmatpush1.bf16.msra.mxu0 %v1421
    %2086 = vmatprep.subr.bf16.mxu0 0
    %2087 = vmatpush1.bf16.msra.mxu0 %v1618
    %2088 = vmatprep.subr.bf16.mxu0 0
    %2089 = vmatpush1.bf16.msra.mxu0 0
    %2090 = vmatprep.subr.bf16.mxu0 0
    %2091 = vmatpush1.bf16.msra.mxu0 0
    %2092 = vmatprep.mubr.bf16.mxu0 %v1614
    %2093 = vmatmul.mubr.bf16.gmra.mrb[0].mxu0 %v87
    %v2094 = vpop.f32.mrb[0].mxu0
    %v2095 = vadd.f32 %v2055, %v2094
    %v2096 = vpop.f32.mrb[0].mxu0
    %v2097 = vpop.f32.mrb[0].mxu0
    %v2098 = vpop.f32.mrb[0].mxu0
    %2099 = vdwg.mxu0
    %v2100 = vmul.f32 %v2095, 0.5
    %v2101 = vtanh.pop %v2100
    %v2102 = vadd.f32 %v2101, 1.0
    %v2103 = vmul.f32 %v2102, 0.5
    %v2104 = vpack.c.bf16 %v2103, %v2103
    %2105 = vst [vmem:[%s3] sm:$0xf] %v2104
    // Predicated region
    $region22: #{starting_network_forward.1} parent=1 // pred_check
      _
    $region23: #{starting_network_forward.1} parent=1 // pred_check_branch
      %2107 = sbr.rel (0) target = $region25
    $region24: #{starting_network_forward.1} parent=1 // pred_region
      _
    $region25: #{starting_network_forward.1} parent=1 // pred_fallthru
      _
    // Predicated region
    $region26: #{starting_network_forward.1} parent=1 // pred_check
      _
    $region27: #{starting_network_forward.1} parent=1 // pred_check_branch
      %2109 = sbr.rel (0) target = $region29
    $region28: #{starting_network_forward.1} parent=1 // pred_region
      _
    $region29: #{starting_network_forward.1} parent=1 // pred_fallthru
      _
    %2110 = vsyncpa [#allocation3], 1
    %2111 = vsyncpa [#allocation5], 1

</llo_original>
